<compile_context>
chip_gen: v7x
topology: tpu7x:2x2x1
jax: 0.10.0
libtpu: 0.0.40
codegen_flags: <defaults>
</compile_context>

<pallas_src>
import functools

import jax
import jax.numpy as jnp
from jax import lax
from jax.experimental import pallas as pl
from jax.experimental.pallas import tpu as pltpu


_VMEM_SPEC = pl.BlockSpec(memory_space=pltpu.MemorySpace.VMEM)


# ----------------------------- Fused Pallas kernel ---------------------------

def encoder_kernel(ids_ref, emb_ref, w_ih_ref, w_hh_ref, b_ref,
                   y_ref, hn_ref, cn_ref,
                   x_scr,
                   *, T, B, H, E, n_layers):
    """Embedding + n_layers LSTM layers, fully fused, recurrence in registers.

    ids_ref  : (T*B, 1)             int32   flattened token ids
    emb_ref  : (V, E)               float32 embedding table
    w_ih_ref : (n_layers, Dmax, 4H) float32 input->gates (rows >= true in_sz
                                            are zero-padded purely for stacking;
                                            the kernel slices to the true width)
    w_hh_ref : (n_layers, H, 4H)    float32 hidden->gates
    b_ref    : (n_layers, 1, 4H)    float32 combined bias (b_ih + b_hh)
    y_ref    : (T*B, H)             float32 last-layer hidden states
    hn_ref   : (n_layers, B, H)     float32 final hidden state per layer
    cn_ref   : (n_layers, B, H)     float32 final cell state per layer
    x_scr    : (T*B, H)             VMEM    inter-layer activation buffer
                                            (only used when n_layers > 1)

    Gate column order matches PyTorch: [i | f | g | o].
    NOTE: the g-gate columns of W_ih / W_hh / b arrive pre-scaled by 2 so that
    tanh(x) can be computed as 2*sigmoid(2x) - 1 from the single full-width
    sigmoid (one fewer EUP transcendental on the serial chain per timestep).
    """
    TB = T * B
    V = emb_ref.shape[0]
    Dmax = w_ih_ref.shape[1]

    # ---- Embedding: one-hot matmul on the MXU (tiny vocab, table in VMEM) ---
    ids = ids_ref[...]                                          # (TB, 1)
    iota_v = lax.broadcasted_iota(jnp.int32, (TB, V), 1)
    onehot = (ids == iota_v).astype(jnp.float32)                # (TB, V)
    emb = jnp.dot(onehot, emb_ref[...],
                  preferred_element_type=jnp.float32)           # (TB, E) traced
    # Dropout on embedded: identity (eval mode).

    # --------------------------- LSTM layers --------------------------------
    for layer in range(n_layers):                               # static unroll
        in_sz = E if layer == 0 else H
        w_ih_full = w_ih_ref[layer]                             # (Dmax, 4H)
        w_ih = w_ih_full if in_sz == Dmax else w_ih_full[:in_sz, :]
        w_hh = w_hh_ref[layer]                                  # (H, 4H) loop-invariant
        b = b_ref[layer]                                        # (1, 4H)

        # Layer input: traced embedding for layer 0, inter-layer VMEM scratch
        # otherwise (inter-layer dropout is identity in eval mode).
        layer_in = emb if layer == 0 else x_scr[...]            # (TB, in_sz)

        # Hoisted input projection + bias over ALL timesteps at once,
        # kept as a traced value (~2 vregs at these sizes).
        gates_x = jnp.dot(layer_in, w_ih,
                          preferred_element_type=jnp.float32) + b   # (TB, 4H)

        # Recurrent state lives in vregs across the unrolled time loop.
        h = jnp.zeros((B, H), jnp.float32)
        c = jnp.zeros((B, H), jnp.float32)

        last_layer = layer == n_layers - 1
        for t in range(T):                                      # static unroll
            gates = gates_x[t * B:(t + 1) * B, :] + jnp.dot(
                h, w_hh, preferred_element_type=jnp.float32
            )                                                   # (B, 4H)
            # Single full-width transcendental push (EUP), then static slices.
            sig = jax.nn.sigmoid(gates)
            i_g = sig[:, 0 * H:1 * H]
            f_g = sig[:, 1 * H:2 * H]
            o_g = sig[:, 3 * H:4 * H]
            # g-gate columns were pre-scaled by 2: 2*sigmoid(2x) - 1 == tanh(x).
            g_g = 2.0 * sig[:, 2 * H:3 * H] - 1.0
            c = f_g * c + i_g * g_g
            h = o_g * jnp.tanh(c)                               # 2nd (last) EUP push

            row = pl.ds(t * B, B)                               # static offset
            if last_layer:
                y_ref[row, :] = h                               # direct output store
            else:
                x_scr[row, :] = h                               # feed next layer

        hn_ref[layer] = h                                       # once per layer
        cn_ref[layer] = c


# --------------------------------- Wrapper ------------------------------------

def encoder_forward(src, stacked_params):
    """Equivalent of Encoder.forward(src) -> (output, (h_n, c_n))."""
    T, B = src.shape
    emb_table = stacked_params["embedding"]          # (V, E)
    w_ih = stacked_params["w_ih"]                    # (n_layers, Dmax, 4H)
    w_hh = stacked_params["w_hh"]                    # (n_layers, H, 4H)
    b = stacked_params["b"]                          # (n_layers, 1, 4H)
    V, E = emb_table.shape
    n_layers, H = w_hh.shape[0], w_hh.shape[1]
    d_max = w_ih.shape[1]
    TB = T * B

    # Weight prep (once): fold a 2x scale into the g-gate columns so the kernel
    # can recover tanh from the full-width sigmoid (2*sigmoid(2x) - 1).
    g_scale = jnp.concatenate([
        jnp.ones((2 * H,), jnp.float32),
        jnp.full((H,), 2.0, jnp.float32),
        jnp.ones((H,), jnp.float32),
    ])                                               # (4H,)
    w_ih_k = w_ih * g_scale
    w_hh_k = w_hh * g_scale
    b_k = b * g_scale

    ids = src.reshape(TB, 1).astype(jnp.int32)

    kernel = functools.partial(
        encoder_kernel, T=T, B=B, H=H, E=E, n_layers=n_layers
    )
    y_flat, h_n, c_n = pl.pallas_call(
        kernel,
        out_shape=(
            jax.ShapeDtypeStruct((TB, H), jnp.float32),
            jax.ShapeDtypeStruct((n_layers, B, H), jnp.float32),
            jax.ShapeDtypeStruct((n_layers, B, H), jnp.float32),
        ),
        in_specs=[_VMEM_SPEC] * 5,
        out_specs=(_VMEM_SPEC, _VMEM_SPEC, _VMEM_SPEC),
        scratch_shapes=[
            pltpu.VMEM((TB, H), jnp.float32),        # inter-layer activations
        ],
        compiler_params=pltpu.CompilerParams(
            # Well under the v7x 64 MiB physical per-TC VMEM; a no-op at these
            # toy sizes but keeps the budget plan v7x-safe when scaled.
            vmem_limit_bytes=32 * 1024 * 1024,
        ),
    )(ids, emb_table, w_ih_k, w_hh_k, b_k)

    output = y_flat.reshape(T, B, H)                 # free, outside the kernel
    return output, (h_n, c_n)


# --------------------------- Pure-JAX reference ------------------------------

def encoder_reference(src, layer_params, emb_table, n_layers):
    embedded = jnp.take(emb_table, src, axis=0)      # (T, B, E)
    x = embedded
    h_list, c_list = [], []
    for layer in range(n_layers):
        w_ih, w_hh, b = layer_params[layer]
        H = w_hh.shape[0]
        B = x.shape[1]

        def step(carry, x_t):
            h, c = carry
            gates = x_t @ w_ih + h @ w_hh + b[0]
            i_g = jax.nn.sigmoid(gates[:, 0 * H:1 * H])
            f_g = jax.nn.sigmoid(gates[:, 1 * H:2 * H])
            g_g = jnp.tanh(gates[:, 2 * H:3 * H])
            o_g = jax.nn.sigmoid(gates[:, 3 * H:4 * H])
            c_new = f_g * c + i_g * g_g
            h_new = o_g * jnp.tanh(c_new)
            return (h_new, c_new), h_new

        h0 = jnp.zeros((B, H), jnp.float32)
        c0 = jnp.zeros((B, H), jnp.float32)
        (h_n, c_n), ys = lax.scan(step, (h0, c0), x)
        h_list.append(h_n)
        c_list.append(c_n)
        x = ys
    return x, (jnp.stack(h_list), jnp.stack(c_list))


# --------------------------------- Main --------------------------------------

if __name__ == "__main__":
    # Module hyperparameters (small, consistent with Encoder.__init__).
    input_dim = 50      # vocab size
    emb_dim = 32
    hid_dim = 32
    n_layers = 2
    dropout_p = 0.1     # unused at eval time

    T, B = 8, 2         # seq_len, batch

    key = jax.random.PRNGKey(0)
    k_emb, k_src, *k_layers = jax.random.split(key, 2 + 3 * n_layers)

    scale = 1.0 / jnp.sqrt(jnp.float32(hid_dim))
    emb_table = jax.random.normal(k_emb, (input_dim, emb_dim), jnp.float32) * 0.1

    layer_params = []       # unpadded per-layer (for the pure-JAX reference)
    d_max = max(emb_dim, hid_dim)
    w_ih_stack, w_hh_stack, b_stack = [], [], []
    for layer in range(n_layers):
        in_sz = emb_dim if layer == 0 else hid_dim
        k1, k2, k3 = k_layers[3 * layer:3 * layer + 3]
        # PyTorch stores weight_ih as (4H, in); we pre-transpose to (in, 4H).
        # Gate column order matches PyTorch: [i | f | g | o].
        w_ih_t = jax.random.uniform(k1, (in_sz, 4 * hid_dim), jnp.float32,
                                    -scale, scale)
        w_hh_t = jax.random.uniform(k2, (hid_dim, 4 * hid_dim), jnp.float32,
                                    -scale, scale)
        # Combined bias b_ih + b_hh, kept 2D (1, 4H) for TPU layout.
        b = jax.random.uniform(k3, (1, 4 * hid_dim), jnp.float32, -scale, scale)
        layer_params.append((w_ih_t, w_hh_t, b))
        # Zero-pad input rows so every layer's W_ih stacks to the same shape
        # (the kernel slices back to the true input width per layer).
        w_ih_stack.append(jnp.pad(w_ih_t, ((0, d_max - in_sz), (0, 0))))
        w_hh_stack.append(w_hh_t)
        b_stack.append(b)

    stacked_params = {
        "embedding": emb_table,
        "w_ih": jnp.stack(w_ih_stack, axis=0),   # (n_layers, Dmax, 4H)
        "w_hh": jnp.stack(w_hh_stack, axis=0),   # (n_layers, H, 4H)
        "b": jnp.stack(b_stack, axis=0),         # (n_layers, 1, 4H)
    }

    src = jax.random.randint(k_src, (T, B), 0, input_dim, jnp.int32)

    output, (h_n, c_n) = encoder_forward(src, stacked_params)
    output = jax.block_until_ready(output)
    h_n = jax.block_until_ready(h_n)
    c_n = jax.block_until_ready(c_n)

    # Sanity check against a pure-JAX reference.
    ref_out, (ref_h, ref_c) = encoder_reference(src, layer_params, emb_table,
                                                n_layers)
    assert output.shape == (T, B, hid_dim)
    assert h_n.shape == (n_layers, B, hid_dim)
    assert c_n.shape == (n_layers, B, hid_dim)
    assert jnp.allclose(output, ref_out, atol=1e-3, rtol=1e-3)
    assert jnp.allclose(h_n, ref_h, atol=1e-3, rtol=1e-3)
    assert jnp.allclose(c_n, ref_c, atol=1e-3, rtol=1e-3)

    print("KERNEL_OK")
</pallas_src>

<mosaic_0001>
module attributes {stable_mosaic.version = 11 : i64} {
  func.func @encoder_kernel(%arg0: memref<16x1xi32, #tpu.memory_space<vmem>>, %arg1: memref<50x32xf32, #tpu.memory_space<vmem>>, %arg2: memref<2x32x128xf32, #tpu.memory_space<vmem>>, %arg3: memref<2x32x128xf32, #tpu.memory_space<vmem>>, %arg4: memref<2x1x128xf32, #tpu.memory_space<vmem>>, %arg5: memref<16x32xf32, #tpu.memory_space<vmem>>, %arg6: memref<2x2x32xf32, #tpu.memory_space<vmem>>, %arg7: memref<2x2x32xf32, #tpu.memory_space<vmem>>, %arg8: memref<16x32xf32, #tpu.memory_space<vmem>>) attributes {dimension_semantics = [], scalar_prefetch = 0 : i64, scratch_operands = 1 : i64, tpu.core_type = #tpu.core_type<tc>} {
    %c0 = arith.constant 0 : index
    %c0_0 = arith.constant 0 : index
    %0 = vector.load %arg0[%c0, %c0_0] : memref<16x1xi32, #tpu.memory_space<vmem>>, vector<16x1xi32>
    %1 = tpu.iota {dimensions = array<i32: 1>} : vector<16x50xi32>
    %2 = vector.broadcast %0 : vector<16x1xi32> to vector<16x50xi32>
    %3 = arith.cmpi eq, %2, %1 : vector<16x50xi32>
    %4 = arith.extui %3 : vector<16x50xi1> to vector<16x50xi32>
    %5 = arith.sitofp %4 : vector<16x50xi32> to vector<16x50xf32>
    %c0_1 = arith.constant 0 : index
    %c0_2 = arith.constant 0 : index
    %6 = vector.load %arg1[%c0_1, %c0_2] : memref<50x32xf32, #tpu.memory_space<vmem>>, vector<50x32xf32>
    %cst = arith.constant dense<0.000000e+00> : vector<16x32xf32>
    %7 = tpu.matmul %5, %6, %cst {dimension_numbers = #tpu.dot_dimension_numbers<[1], [0], [0], [1], [0, 0, 1, 1], [], []>} : vector<16x50xf32>, vector<50x32xf32>, vector<16x32xf32> -> vector<16x32xf32>
    %c0_3 = arith.constant 0 : index
    %c0_4 = arith.constant 0 : index
    %c0_5 = arith.constant 0 : index
    %8 = vector.load %arg2[%c0_3, %c0_4, %c0_5] : memref<2x32x128xf32, #tpu.memory_space<vmem>>, vector<1x32x128xf32>
    %9 = vector.shape_cast %8 : vector<1x32x128xf32> to vector<32x128xf32>
    %c0_6 = arith.constant 0 : index
    %c0_7 = arith.constant 0 : index
    %c0_8 = arith.constant 0 : index
    %10 = vector.load %arg3[%c0_6, %c0_7, %c0_8] : memref<2x32x128xf32, #tpu.memory_space<vmem>>, vector<1x32x128xf32>
    %11 = vector.shape_cast %10 : vector<1x32x128xf32> to vector<32x128xf32>
    %c0_9 = arith.constant 0 : index
    %c0_10 = arith.constant 0 : index
    %c0_11 = arith.constant 0 : index
    %12 = vector.load %arg4[%c0_9, %c0_10, %c0_11] : memref<2x1x128xf32, #tpu.memory_space<vmem>>, vector<1x1x128xf32>
    %13 = vector.shape_cast %12 : vector<1x1x128xf32> to vector<1x128xf32>
    %cst_12 = arith.constant dense<0.000000e+00> : vector<16x128xf32>
    %14 = tpu.matmul %7, %9, %cst_12 {dimension_numbers = #tpu.dot_dimension_numbers<[1], [0], [0], [1], [0, 0, 1, 1], [], []>} : vector<16x32xf32>, vector<32x128xf32>, vector<16x128xf32> -> vector<16x128xf32>
    %15 = vector.broadcast %13 : vector<1x128xf32> to vector<16x128xf32>
    %16 = arith.addf %14, %15 : vector<16x128xf32>
    %cst_13 = arith.constant 0.000000e+00 : f32
    %17 = vector.broadcast %cst_13 : f32 to vector<2x32xf32>
    %cst_14 = arith.constant 0.000000e+00 : f32
    %18 = vector.broadcast %cst_14 : f32 to vector<2x32xf32>
    %19 = vector.extract_strided_slice %16 {offsets = [0, 0], sizes = [2, 128], strides = [1, 1]} : vector<16x128xf32> to vector<2x128xf32>
    %cst_15 = arith.constant dense<0.000000e+00> : vector<2x128xf32>
    %20 = tpu.matmul %17, %11, %cst_15 {dimension_numbers = #tpu.dot_dimension_numbers<[1], [0], [0], [1], [0, 0, 1, 1], [], []>} : vector<2x32xf32>, vector<32x128xf32>, vector<2x128xf32> -> vector<2x128xf32>
    %21 = arith.addf %19, %20 : vector<2x128xf32>
    %22 = arith.negf %21 : vector<2x128xf32>
    %23 = math.exp %22 : vector<2x128xf32>
    %cst_16 = arith.constant 1.000000e+00 : f32
    %24 = vector.broadcast %cst_16 : f32 to vector<2x128xf32>
    %25 = arith.addf %24, %23 : vector<2x128xf32>
    %26 = arith.divf %24, %25 : vector<2x128xf32>
    %27 = vector.extract_strided_slice %26 {offsets = [0, 0], sizes = [2, 32], strides = [1, 1]} : vector<2x128xf32> to vector<2x32xf32>
    %28 = vector.extract_strided_slice %26 {offsets = [0, 32], sizes = [2, 32], strides = [1, 1]} : vector<2x128xf32> to vector<2x32xf32>
    %29 = vector.extract_strided_slice %26 {offsets = [0, 96], sizes = [2, 32], strides = [1, 1]} : vector<2x128xf32> to vector<2x32xf32>
    %30 = vector.extract_strided_slice %26 {offsets = [0, 64], sizes = [2, 32], strides = [1, 1]} : vector<2x128xf32> to vector<2x32xf32>
    %cst_17 = arith.constant 2.000000e+00 : f32
    %31 = vector.broadcast %cst_17 : f32 to vector<2x32xf32>
    %32 = arith.mulf %31, %30 : vector<2x32xf32>
    %cst_18 = arith.constant 1.000000e+00 : f32
    %33 = vector.broadcast %cst_18 : f32 to vector<2x32xf32>
    %34 = arith.subf %32, %33 : vector<2x32xf32>
    %35 = arith.mulf %28, %18 : vector<2x32xf32>
    %36 = arith.mulf %27, %34 : vector<2x32xf32>
    %37 = arith.addf %35, %36 : vector<2x32xf32>
    %38 = math.tanh %37 : vector<2x32xf32>
    %39 = arith.mulf %29, %38 : vector<2x32xf32>
    %c0_19 = arith.constant 0 : index
    %c0_20 = arith.constant 0 : index
    %40 = vector.load %arg8[%c0_19, %c0_20] : memref<16x32xf32, #tpu.memory_space<vmem>>, vector<2x32xf32>
    tpu.vector_store %arg8[%c0_19, %c0_20], %39 {strides = array<i32>} : memref<16x32xf32, #tpu.memory_space<vmem>>, vector<2x32xf32>,
    %41 = vector.extract_strided_slice %16 {offsets = [2, 0], sizes = [2, 128], strides = [1, 1]} : vector<16x128xf32> to vector<2x128xf32>
    %cst_21 = arith.constant dense<0.000000e+00> : vector<2x128xf32>
    %42 = tpu.matmul %39, %11, %cst_21 {dimension_numbers = #tpu.dot_dimension_numbers<[1], [0], [0], [1], [0, 0, 1, 1], [], []>} : vector<2x32xf32>, vector<32x128xf32>, vector<2x128xf32> -> vector<2x128xf32>
    %43 = arith.addf %41, %42 : vector<2x128xf32>
    %44 = arith.negf %43 : vector<2x128xf32>
    %45 = math.exp %44 : vector<2x128xf32>
    %cst_22 = arith.constant 1.000000e+00 : f32
    %46 = vector.broadcast %cst_22 : f32 to vector<2x128xf32>
    %47 = arith.addf %46, %45 : vector<2x128xf32>
    %48 = arith.divf %46, %47 : vector<2x128xf32>
    %49 = vector.extract_strided_slice %48 {offsets = [0, 0], sizes = [2, 32], strides = [1, 1]} : vector<2x128xf32> to vector<2x32xf32>
    %50 = vector.extract_strided_slice %48 {offsets = [0, 32], sizes = [2, 32], strides = [1, 1]} : vector<2x128xf32> to vector<2x32xf32>
    %51 = vector.extract_strided_slice %48 {offsets = [0, 96], sizes = [2, 32], strides = [1, 1]} : vector<2x128xf32> to vector<2x32xf32>
    %52 = vector.extract_strided_slice %48 {offsets = [0, 64], sizes = [2, 32], strides = [1, 1]} : vector<2x128xf32> to vector<2x32xf32>
    %cst_23 = arith.constant 2.000000e+00 : f32
    %53 = vector.broadcast %cst_23 : f32 to vector<2x32xf32>
    %54 = arith.mulf %53, %52 : vector<2x32xf32>
    %cst_24 = arith.constant 1.000000e+00 : f32
    %55 = vector.broadcast %cst_24 : f32 to vector<2x32xf32>
    %56 = arith.subf %54, %55 : vector<2x32xf32>
    %57 = arith.mulf %50, %37 : vector<2x32xf32>
    %58 = arith.mulf %49, %56 : vector<2x32xf32>
    %59 = arith.addf %57, %58 : vector<2x32xf32>
    %60 = math.tanh %59 : vector<2x32xf32>
    %61 = arith.mulf %51, %60 : vector<2x32xf32>
    %c2 = arith.constant 2 : index
    %c0_25 = arith.constant 0 : index
    %62 = vector.load %arg8[%c2, %c0_25] : memref<16x32xf32, #tpu.memory_space<vmem>>, vector<2x32xf32>
    tpu.vector_store %arg8[%c2, %c0_25], %61 {strides = array<i32>} : memref<16x32xf32, #tpu.memory_space<vmem>>, vector<2x32xf32>,
    %63 = vector.extract_strided_slice %16 {offsets = [4, 0], sizes = [2, 128], strides = [1, 1]} : vector<16x128xf32> to vector<2x128xf32>
    %cst_26 = arith.constant dense<0.000000e+00> : vector<2x128xf32>
    %64 = tpu.matmul %61, %11, %cst_26 {dimension_numbers = #tpu.dot_dimension_numbers<[1], [0], [0], [1], [0, 0, 1, 1], [], []>} : vector<2x32xf32>, vector<32x128xf32>, vector<2x128xf32> -> vector<2x128xf32>
    %65 = arith.addf %63, %64 : vector<2x128xf32>
    %66 = arith.negf %65 : vector<2x128xf32>
    %67 = math.exp %66 : vector<2x128xf32>
    %cst_27 = arith.constant 1.000000e+00 : f32
    %68 = vector.broadcast %cst_27 : f32 to vector<2x128xf32>
    %69 = arith.addf %68, %67 : vector<2x128xf32>
    %70 = arith.divf %68, %69 : vector<2x128xf32>
    %71 = vector.extract_strided_slice %70 {offsets = [0, 0], sizes = [2, 32], strides = [1, 1]} : vector<2x128xf32> to vector<2x32xf32>
    %72 = vector.extract_strided_slice %70 {offsets = [0, 32], sizes = [2, 32], strides = [1, 1]} : vector<2x128xf32> to vector<2x32xf32>
    %73 = vector.extract_strided_slice %70 {offsets = [0, 96], sizes = [2, 32], strides = [1, 1]} : vector<2x128xf32> to vector<2x32xf32>
    %74 = vector.extract_strided_slice %70 {offsets = [0, 64], sizes = [2, 32], strides = [1, 1]} : vector<2x128xf32> to vector<2x32xf32>
    %cst_28 = arith.constant 2.000000e+00 : f32
    %75 = vector.broadcast %cst_28 : f32 to vector<2x32xf32>
    %76 = arith.mulf %75, %74 : vector<2x32xf32>
    %cst_29 = arith.constant 1.000000e+00 : f32
    %77 = vector.broadcast %cst_29 : f32 to vector<2x32xf32>
    %78 = arith.subf %76, %77 : vector<2x32xf32>
    %79 = arith.mulf %72, %59 : vector<2x32xf32>
    %80 = arith.mulf %71, %78 : vector<2x32xf32>
    %81 = arith.addf %79, %80 : vector<2x32xf32>
    %82 = math.tanh %81 : vector<2x32xf32>
    %83 = arith.mulf %73, %82 : vector<2x32xf32>
    %c4 = arith.constant 4 : index
    %c0_30 = arith.constant 0 : index
    %84 = vector.load %arg8[%c4, %c0_30] : memref<16x32xf32, #tpu.memory_space<vmem>>, vector<2x32xf32>
    tpu.vector_store %arg8[%c4, %c0_30], %83 {strides = array<i32>} : memref<16x32xf32, #tpu.memory_space<vmem>>, vector<2x32xf32>,
    %85 = vector.extract_strided_slice %16 {offsets = [6, 0], sizes = [2, 128], strides = [1, 1]} : vector<16x128xf32> to vector<2x128xf32>
    %cst_31 = arith.constant dense<0.000000e+00> : vector<2x128xf32>
    %86 = tpu.matmul %83, %11, %cst_31 {dimension_numbers = #tpu.dot_dimension_numbers<[1], [0], [0], [1], [0, 0, 1, 1], [], []>} : vector<2x32xf32>, vector<32x128xf32>, vector<2x128xf32> -> vector<2x128xf32>
    %87 = arith.addf %85, %86 : vector<2x128xf32>
    %88 = arith.negf %87 : vector<2x128xf32>
    %89 = math.exp %88 : vector<2x128xf32>
    %cst_32 = arith.constant 1.000000e+00 : f32
    %90 = vector.broadcast %cst_32 : f32 to vector<2x128xf32>
    %91 = arith.addf %90, %89 : vector<2x128xf32>
    %92 = arith.divf %90, %91 : vector<2x128xf32>
    %93 = vector.extract_strided_slice %92 {offsets = [0, 0], sizes = [2, 32], strides = [1, 1]} : vector<2x128xf32> to vector<2x32xf32>
    %94 = vector.extract_strided_slice %92 {offsets = [0, 32], sizes = [2, 32], strides = [1, 1]} : vector<2x128xf32> to vector<2x32xf32>
    %95 = vector.extract_strided_slice %92 {offsets = [0, 96], sizes = [2, 32], strides = [1, 1]} : vector<2x128xf32> to vector<2x32xf32>
    %96 = vector.extract_strided_slice %92 {offsets = [0, 64], sizes = [2, 32], strides = [1, 1]} : vector<2x128xf32> to vector<2x32xf32>
    %cst_33 = arith.constant 2.000000e+00 : f32
    %97 = vector.broadcast %cst_33 : f32 to vector<2x32xf32>
    %98 = arith.mulf %97, %96 : vector<2x32xf32>
    %cst_34 = arith.constant 1.000000e+00 : f32
    %99 = vector.broadcast %cst_34 : f32 to vector<2x32xf32>
    %100 = arith.subf %98, %99 : vector<2x32xf32>
    %101 = arith.mulf %94, %81 : vector<2x32xf32>
    %102 = arith.mulf %93, %100 : vector<2x32xf32>
    %103 = arith.addf %101, %102 : vector<2x32xf32>
    %104 = math.tanh %103 : vector<2x32xf32>
    %105 = arith.mulf %95, %104 : vector<2x32xf32>
    %c6 = arith.constant 6 : index
    %c0_35 = arith.constant 0 : index
    %106 = vector.load %arg8[%c6, %c0_35] : memref<16x32xf32, #tpu.memory_space<vmem>>, vector<2x32xf32>
    tpu.vector_store %arg8[%c6, %c0_35], %105 {strides = array<i32>} : memref<16x32xf32, #tpu.memory_space<vmem>>, vector<2x32xf32>,
    %107 = vector.extract_strided_slice %16 {offsets = [8, 0], sizes = [2, 128], strides = [1, 1]} : vector<16x128xf32> to vector<2x128xf32>
    %cst_36 = arith.constant dense<0.000000e+00> : vector<2x128xf32>
    %108 = tpu.matmul %105, %11, %cst_36 {dimension_numbers = #tpu.dot_dimension_numbers<[1], [0], [0], [1], [0, 0, 1, 1], [], []>} : vector<2x32xf32>, vector<32x128xf32>, vector<2x128xf32> -> vector<2x128xf32>
    %109 = arith.addf %107, %108 : vector<2x128xf32>
    %110 = arith.negf %109 : vector<2x128xf32>
    %111 = math.exp %110 : vector<2x128xf32>
    %cst_37 = arith.constant 1.000000e+00 : f32
    %112 = vector.broadcast %cst_37 : f32 to vector<2x128xf32>
    %113 = arith.addf %112, %111 : vector<2x128xf32>
    %114 = arith.divf %112, %113 : vector<2x128xf32>
    %115 = vector.extract_strided_slice %114 {offsets = [0, 0], sizes = [2, 32], strides = [1, 1]} : vector<2x128xf32> to vector<2x32xf32>
    %116 = vector.extract_strided_slice %114 {offsets = [0, 32], sizes = [2, 32], strides = [1, 1]} : vector<2x128xf32> to vector<2x32xf32>
    %117 = vector.extract_strided_slice %114 {offsets = [0, 96], sizes = [2, 32], strides = [1, 1]} : vector<2x128xf32> to vector<2x32xf32>
    %118 = vector.extract_strided_slice %114 {offsets = [0, 64], sizes = [2, 32], strides = [1, 1]} : vector<2x128xf32> to vector<2x32xf32>
    %cst_38 = arith.constant 2.000000e+00 : f32
    %119 = vector.broadcast %cst_38 : f32 to vector<2x32xf32>
    %120 = arith.mulf %119, %118 : vector<2x32xf32>
    %cst_39 = arith.constant 1.000000e+00 : f32
    %121 = vector.broadcast %cst_39 : f32 to vector<2x32xf32>
    %122 = arith.subf %120, %121 : vector<2x32xf32>
    %123 = arith.mulf %116, %103 : vector<2x32xf32>
    %124 = arith.mulf %115, %122 : vector<2x32xf32>
    %125 = arith.addf %123, %124 : vector<2x32xf32>
    %126 = math.tanh %125 : vector<2x32xf32>
    %127 = arith.mulf %117, %126 : vector<2x32xf32>
    %c8 = arith.constant 8 : index
    %c0_40 = arith.constant 0 : index
    %128 = vector.load %arg8[%c8, %c0_40] : memref<16x32xf32, #tpu.memory_space<vmem>>, vector<2x32xf32>
    tpu.vector_store %arg8[%c8, %c0_40], %127 {strides = array<i32>} : memref<16x32xf32, #tpu.memory_space<vmem>>, vector<2x32xf32>,
    %129 = vector.extract_strided_slice %16 {offsets = [10, 0], sizes = [2, 128], strides = [1, 1]} : vector<16x128xf32> to vector<2x128xf32>
    %cst_41 = arith.constant dense<0.000000e+00> : vector<2x128xf32>
    %130 = tpu.matmul %127, %11, %cst_41 {dimension_numbers = #tpu.dot_dimension_numbers<[1], [0], [0], [1], [0, 0, 1, 1], [], []>} : vector<2x32xf32>, vector<32x128xf32>, vector<2x128xf32> -> vector<2x128xf32>
    %131 = arith.addf %129, %130 : vector<2x128xf32>
    %132 = arith.negf %131 : vector<2x128xf32>
    %133 = math.exp %132 : vector<2x128xf32>
    %cst_42 = arith.constant 1.000000e+00 : f32
    %134 = vector.broadcast %cst_42 : f32 to vector<2x128xf32>
    %135 = arith.addf %134, %133 : vector<2x128xf32>
    %136 = arith.divf %134, %135 : vector<2x128xf32>
    %137 = vector.extract_strided_slice %136 {offsets = [0, 0], sizes = [2, 32], strides = [1, 1]} : vector<2x128xf32> to vector<2x32xf32>
    %138 = vector.extract_strided_slice %136 {offsets = [0, 32], sizes = [2, 32], strides = [1, 1]} : vector<2x128xf32> to vector<2x32xf32>
    %139 = vector.extract_strided_slice %136 {offsets = [0, 96], sizes = [2, 32], strides = [1, 1]} : vector<2x128xf32> to vector<2x32xf32>
    %140 = vector.extract_strided_slice %136 {offsets = [0, 64], sizes = [2, 32], strides = [1, 1]} : vector<2x128xf32> to vector<2x32xf32>
    %cst_43 = arith.constant 2.000000e+00 : f32
    %141 = vector.broadcast %cst_43 : f32 to vector<2x32xf32>
    %142 = arith.mulf %141, %140 : vector<2x32xf32>
    %cst_44 = arith.constant 1.000000e+00 : f32
    %143 = vector.broadcast %cst_44 : f32 to vector<2x32xf32>
    %144 = arith.subf %142, %143 : vector<2x32xf32>
    %145 = arith.mulf %138, %125 : vector<2x32xf32>
    %146 = arith.mulf %137, %144 : vector<2x32xf32>
    %147 = arith.addf %145, %146 : vector<2x32xf32>
    %148 = math.tanh %147 : vector<2x32xf32>
    %149 = arith.mulf %139, %148 : vector<2x32xf32>
    %c10 = arith.constant 10 : index
    %c0_45 = arith.constant 0 : index
    %150 = vector.load %arg8[%c10, %c0_45] : memref<16x32xf32, #tpu.memory_space<vmem>>, vector<2x32xf32>
    tpu.vector_store %arg8[%c10, %c0_45], %149 {strides = array<i32>} : memref<16x32xf32, #tpu.memory_space<vmem>>, vector<2x32xf32>,
    %151 = vector.extract_strided_slice %16 {offsets = [12, 0], sizes = [2, 128], strides = [1, 1]} : vector<16x128xf32> to vector<2x128xf32>
    %cst_46 = arith.constant dense<0.000000e+00> : vector<2x128xf32>
    %152 = tpu.matmul %149, %11, %cst_46 {dimension_numbers = #tpu.dot_dimension_numbers<[1], [0], [0], [1], [0, 0, 1, 1], [], []>} : vector<2x32xf32>, vector<32x128xf32>, vector<2x128xf32> -> vector<2x128xf32>
    %153 = arith.addf %151, %152 : vector<2x128xf32>
    %154 = arith.negf %153 : vector<2x128xf32>
    %155 = math.exp %154 : vector<2x128xf32>
    %cst_47 = arith.constant 1.000000e+00 : f32
    %156 = vector.broadcast %cst_47 : f32 to vector<2x128xf32>
    %157 = arith.addf %156, %155 : vector<2x128xf32>
    %158 = arith.divf %156, %157 : vector<2x128xf32>
    %159 = vector.extract_strided_slice %158 {offsets = [0, 0], sizes = [2, 32], strides = [1, 1]} : vector<2x128xf32> to vector<2x32xf32>
    %160 = vector.extract_strided_slice %158 {offsets = [0, 32], sizes = [2, 32], strides = [1, 1]} : vector<2x128xf32> to vector<2x32xf32>
    %161 = vector.extract_strided_slice %158 {offsets = [0, 96], sizes = [2, 32], strides = [1, 1]} : vector<2x128xf32> to vector<2x32xf32>
    %162 = vector.extract_strided_slice %158 {offsets = [0, 64], sizes = [2, 32], strides = [1, 1]} : vector<2x128xf32> to vector<2x32xf32>
    %cst_48 = arith.constant 2.000000e+00 : f32
    %163 = vector.broadcast %cst_48 : f32 to vector<2x32xf32>
    %164 = arith.mulf %163, %162 : vector<2x32xf32>
    %cst_49 = arith.constant 1.000000e+00 : f32
    %165 = vector.broadcast %cst_49 : f32 to vector<2x32xf32>
    %166 = arith.subf %164, %165 : vector<2x32xf32>
    %167 = arith.mulf %160, %147 : vector<2x32xf32>
    %168 = arith.mulf %159, %166 : vector<2x32xf32>
    %169 = arith.addf %167, %168 : vector<2x32xf32>
    %170 = math.tanh %169 : vector<2x32xf32>
    %171 = arith.mulf %161, %170 : vector<2x32xf32>
    %c12 = arith.constant 12 : index
    %c0_50 = arith.constant 0 : index
    %172 = vector.load %arg8[%c12, %c0_50] : memref<16x32xf32, #tpu.memory_space<vmem>>, vector<2x32xf32>
    tpu.vector_store %arg8[%c12, %c0_50], %171 {strides = array<i32>} : memref<16x32xf32, #tpu.memory_space<vmem>>, vector<2x32xf32>,
    %173 = vector.extract_strided_slice %16 {offsets = [14, 0], sizes = [2, 128], strides = [1, 1]} : vector<16x128xf32> to vector<2x128xf32>
    %cst_51 = arith.constant dense<0.000000e+00> : vector<2x128xf32>
    %174 = tpu.matmul %171, %11, %cst_51 {dimension_numbers = #tpu.dot_dimension_numbers<[1], [0], [0], [1], [0, 0, 1, 1], [], []>} : vector<2x32xf32>, vector<32x128xf32>, vector<2x128xf32> -> vector<2x128xf32>
    %175 = arith.addf %173, %174 : vector<2x128xf32>
    %176 = arith.negf %175 : vector<2x128xf32>
    %177 = math.exp %176 : vector<2x128xf32>
    %cst_52 = arith.constant 1.000000e+00 : f32
    %178 = vector.broadcast %cst_52 : f32 to vector<2x128xf32>
    %179 = arith.addf %178, %177 : vector<2x128xf32>
    %180 = arith.divf %178, %179 : vector<2x128xf32>
    %181 = vector.extract_strided_slice %180 {offsets = [0, 0], sizes = [2, 32], strides = [1, 1]} : vector<2x128xf32> to vector<2x32xf32>
    %182 = vector.extract_strided_slice %180 {offsets = [0, 32], sizes = [2, 32], strides = [1, 1]} : vector<2x128xf32> to vector<2x32xf32>
    %183 = vector.extract_strided_slice %180 {offsets = [0, 96], sizes = [2, 32], strides = [1, 1]} : vector<2x128xf32> to vector<2x32xf32>
    %184 = vector.extract_strided_slice %180 {offsets = [0, 64], sizes = [2, 32], strides = [1, 1]} : vector<2x128xf32> to vector<2x32xf32>
    %cst_53 = arith.constant 2.000000e+00 : f32
    %185 = vector.broadcast %cst_53 : f32 to vector<2x32xf32>
    %186 = arith.mulf %185, %184 : vector<2x32xf32>
    %cst_54 = arith.constant 1.000000e+00 : f32
    %187 = vector.broadcast %cst_54 : f32 to vector<2x32xf32>
    %188 = arith.subf %186, %187 : vector<2x32xf32>
    %189 = arith.mulf %182, %169 : vector<2x32xf32>
    %190 = arith.mulf %181, %188 : vector<2x32xf32>
    %191 = arith.addf %189, %190 : vector<2x32xf32>
    %192 = math.tanh %191 : vector<2x32xf32>
    %193 = arith.mulf %183, %192 : vector<2x32xf32>
    %c14 = arith.constant 14 : index
    %c0_55 = arith.constant 0 : index
    %194 = vector.load %arg8[%c14, %c0_55] : memref<16x32xf32, #tpu.memory_space<vmem>>, vector<2x32xf32>
    tpu.vector_store %arg8[%c14, %c0_55], %193 {strides = array<i32>} : memref<16x32xf32, #tpu.memory_space<vmem>>, vector<2x32xf32>,
    %c0_56 = arith.constant 0 : index
    %c0_57 = arith.constant 0 : index
    %c0_58 = arith.constant 0 : index
    %195 = vector.load %arg6[%c0_56, %c0_57, %c0_58] : memref<2x2x32xf32, #tpu.memory_space<vmem>>, vector<1x2x32xf32>
    %196 = vector.shape_cast %195 : vector<1x2x32xf32> to vector<2x32xf32>
    %197 = vector.shape_cast %193 : vector<2x32xf32> to vector<1x2x32xf32>
    tpu.vector_store %arg6[%c0_56, %c0_57, %c0_58], %197 {strides = array<i32>} : memref<2x2x32xf32, #tpu.memory_space<vmem>>, vector<1x2x32xf32>,
    %c0_59 = arith.constant 0 : index
    %c0_60 = arith.constant 0 : index
    %c0_61 = arith.constant 0 : index
    %198 = vector.load %arg7[%c0_59, %c0_60, %c0_61] : memref<2x2x32xf32, #tpu.memory_space<vmem>>, vector<1x2x32xf32>
    %199 = vector.shape_cast %198 : vector<1x2x32xf32> to vector<2x32xf32>
    %200 = vector.shape_cast %191 : vector<2x32xf32> to vector<1x2x32xf32>
    tpu.vector_store %arg7[%c0_59, %c0_60, %c0_61], %200 {strides = array<i32>} : memref<2x2x32xf32, #tpu.memory_space<vmem>>, vector<1x2x32xf32>,
    %c1 = arith.constant 1 : index
    %c0_62 = arith.constant 0 : index
    %c0_63 = arith.constant 0 : index
    %201 = vector.load %arg2[%c1, %c0_62, %c0_63] : memref<2x32x128xf32, #tpu.memory_space<vmem>>, vector<1x32x128xf32>
    %202 = vector.shape_cast %201 : vector<1x32x128xf32> to vector<32x128xf32>
    %c1_64 = arith.constant 1 : index
    %c0_65 = arith.constant 0 : index
    %c0_66 = arith.constant 0 : index
    %203 = vector.load %arg3[%c1_64, %c0_65, %c0_66] : memref<2x32x128xf32, #tpu.memory_space<vmem>>, vector<1x32x128xf32>
    %204 = vector.shape_cast %203 : vector<1x32x128xf32> to vector<32x128xf32>
    %c1_67 = arith.constant 1 : index
    %c0_68 = arith.constant 0 : index
    %c0_69 = arith.constant 0 : index
    %205 = vector.load %arg4[%c1_67, %c0_68, %c0_69] : memref<2x1x128xf32, #tpu.memory_space<vmem>>, vector<1x1x128xf32>
    %206 = vector.shape_cast %205 : vector<1x1x128xf32> to vector<1x128xf32>
    %c0_70 = arith.constant 0 : index
    %c0_71 = arith.constant 0 : index
    %207 = vector.load %arg8[%c0_70, %c0_71] : memref<16x32xf32, #tpu.memory_space<vmem>>, vector<16x32xf32>
    %cst_72 = arith.constant dense<0.000000e+00> : vector<16x128xf32>
    %208 = tpu.matmul %207, %202, %cst_72 {dimension_numbers = #tpu.dot_dimension_numbers<[1], [0], [0], [1], [0, 0, 1, 1], [], []>} : vector<16x32xf32>, vector<32x128xf32>, vector<16x128xf32> -> vector<16x128xf32>
    %209 = vector.broadcast %206 : vector<1x128xf32> to vector<16x128xf32>
    %210 = arith.addf %208, %209 : vector<16x128xf32>
    %cst_73 = arith.constant 0.000000e+00 : f32
    %211 = vector.broadcast %cst_73 : f32 to vector<2x32xf32>
    %cst_74 = arith.constant 0.000000e+00 : f32
    %212 = vector.broadcast %cst_74 : f32 to vector<2x32xf32>
    %213 = vector.extract_strided_slice %210 {offsets = [0, 0], sizes = [2, 128], strides = [1, 1]} : vector<16x128xf32> to vector<2x128xf32>
    %cst_75 = arith.constant dense<0.000000e+00> : vector<2x128xf32>
    %214 = tpu.matmul %211, %204, %cst_75 {dimension_numbers = #tpu.dot_dimension_numbers<[1], [0], [0], [1], [0, 0, 1, 1], [], []>} : vector<2x32xf32>, vector<32x128xf32>, vector<2x128xf32> -> vector<2x128xf32>
    %215 = arith.addf %213, %214 : vector<2x128xf32>
    %216 = arith.negf %215 : vector<2x128xf32>
    %217 = math.exp %216 : vector<2x128xf32>
    %cst_76 = arith.constant 1.000000e+00 : f32
    %218 = vector.broadcast %cst_76 : f32 to vector<2x128xf32>
    %219 = arith.addf %218, %217 : vector<2x128xf32>
    %220 = arith.divf %218, %219 : vector<2x128xf32>
    %221 = vector.extract_strided_slice %220 {offsets = [0, 0], sizes = [2, 32], strides = [1, 1]} : vector<2x128xf32> to vector<2x32xf32>
    %222 = vector.extract_strided_slice %220 {offsets = [0, 32], sizes = [2, 32], strides = [1, 1]} : vector<2x128xf32> to vector<2x32xf32>
    %223 = vector.extract_strided_slice %220 {offsets = [0, 96], sizes = [2, 32], strides = [1, 1]} : vector<2x128xf32> to vector<2x32xf32>
    %224 = vector.extract_strided_slice %220 {offsets = [0, 64], sizes = [2, 32], strides = [1, 1]} : vector<2x128xf32> to vector<2x32xf32>
    %cst_77 = arith.constant 2.000000e+00 : f32
    %225 = vector.broadcast %cst_77 : f32 to vector<2x32xf32>
    %226 = arith.mulf %225, %224 : vector<2x32xf32>
    %cst_78 = arith.constant 1.000000e+00 : f32
    %227 = vector.broadcast %cst_78 : f32 to vector<2x32xf32>
    %228 = arith.subf %226, %227 : vector<2x32xf32>
    %229 = arith.mulf %222, %212 : vector<2x32xf32>
    %230 = arith.mulf %221, %228 : vector<2x32xf32>
    %231 = arith.addf %229, %230 : vector<2x32xf32>
    %232 = math.tanh %231 : vector<2x32xf32>
    %233 = arith.mulf %223, %232 : vector<2x32xf32>
    %c0_79 = arith.constant 0 : index
    %c0_80 = arith.constant 0 : index
    %234 = vector.load %arg5[%c0_79, %c0_80] : memref<16x32xf32, #tpu.memory_space<vmem>>, vector<2x32xf32>
    tpu.vector_store %arg5[%c0_79, %c0_80], %233 {strides = array<i32>} : memref<16x32xf32, #tpu.memory_space<vmem>>, vector<2x32xf32>,
    %235 = vector.extract_strided_slice %210 {offsets = [2, 0], sizes = [2, 128], strides = [1, 1]} : vector<16x128xf32> to vector<2x128xf32>
    %cst_81 = arith.constant dense<0.000000e+00> : vector<2x128xf32>
    %236 = tpu.matmul %233, %204, %cst_81 {dimension_numbers = #tpu.dot_dimension_numbers<[1], [0], [0], [1], [0, 0, 1, 1], [], []>} : vector<2x32xf32>, vector<32x128xf32>, vector<2x128xf32> -> vector<2x128xf32>
    %237 = arith.addf %235, %236 : vector<2x128xf32>
    %238 = arith.negf %237 : vector<2x128xf32>
    %239 = math.exp %238 : vector<2x128xf32>
    %cst_82 = arith.constant 1.000000e+00 : f32
    %240 = vector.broadcast %cst_82 : f32 to vector<2x128xf32>
    %241 = arith.addf %240, %239 : vector<2x128xf32>
    %242 = arith.divf %240, %241 : vector<2x128xf32>
    %243 = vector.extract_strided_slice %242 {offsets = [0, 0], sizes = [2, 32], strides = [1, 1]} : vector<2x128xf32> to vector<2x32xf32>
    %244 = vector.extract_strided_slice %242 {offsets = [0, 32], sizes = [2, 32], strides = [1, 1]} : vector<2x128xf32> to vector<2x32xf32>
    %245 = vector.extract_strided_slice %242 {offsets = [0, 96], sizes = [2, 32], strides = [1, 1]} : vector<2x128xf32> to vector<2x32xf32>
    %246 = vector.extract_strided_slice %242 {offsets = [0, 64], sizes = [2, 32], strides = [1, 1]} : vector<2x128xf32> to vector<2x32xf32>
    %cst_83 = arith.constant 2.000000e+00 : f32
    %247 = vector.broadcast %cst_83 : f32 to vector<2x32xf32>
    %248 = arith.mulf %247, %246 : vector<2x32xf32>
    %cst_84 = arith.constant 1.000000e+00 : f32
    %249 = vector.broadcast %cst_84 : f32 to vector<2x32xf32>
    %250 = arith.subf %248, %249 : vector<2x32xf32>
    %251 = arith.mulf %244, %231 : vector<2x32xf32>
    %252 = arith.mulf %243, %250 : vector<2x32xf32>
    %253 = arith.addf %251, %252 : vector<2x32xf32>
    %254 = math.tanh %253 : vector<2x32xf32>
    %255 = arith.mulf %245, %254 : vector<2x32xf32>
    %c2_85 = arith.constant 2 : index
    %c0_86 = arith.constant 0 : index
    %256 = vector.load %arg5[%c2_85, %c0_86] : memref<16x32xf32, #tpu.memory_space<vmem>>, vector<2x32xf32>
    tpu.vector_store %arg5[%c2_85, %c0_86], %255 {strides = array<i32>} : memref<16x32xf32, #tpu.memory_space<vmem>>, vector<2x32xf32>,
    %257 = vector.extract_strided_slice %210 {offsets = [4, 0], sizes = [2, 128], strides = [1, 1]} : vector<16x128xf32> to vector<2x128xf32>
    %cst_87 = arith.constant dense<0.000000e+00> : vector<2x128xf32>
    %258 = tpu.matmul %255, %204, %cst_87 {dimension_numbers = #tpu.dot_dimension_numbers<[1], [0], [0], [1], [0, 0, 1, 1], [], []>} : vector<2x32xf32>, vector<32x128xf32>, vector<2x128xf32> -> vector<2x128xf32>
    %259 = arith.addf %257, %258 : vector<2x128xf32>
    %260 = arith.negf %259 : vector<2x128xf32>
    %261 = math.exp %260 : vector<2x128xf32>
    %cst_88 = arith.constant 1.000000e+00 : f32
    %262 = vector.broadcast %cst_88 : f32 to vector<2x128xf32>
    %263 = arith.addf %262, %261 : vector<2x128xf32>
    %264 = arith.divf %262, %263 : vector<2x128xf32>
    %265 = vector.extract_strided_slice %264 {offsets = [0, 0], sizes = [2, 32], strides = [1, 1]} : vector<2x128xf32> to vector<2x32xf32>
    %266 = vector.extract_strided_slice %264 {offsets = [0, 32], sizes = [2, 32], strides = [1, 1]} : vector<2x128xf32> to vector<2x32xf32>
    %267 = vector.extract_strided_slice %264 {offsets = [0, 96], sizes = [2, 32], strides = [1, 1]} : vector<2x128xf32> to vector<2x32xf32>
    %268 = vector.extract_strided_slice %264 {offsets = [0, 64], sizes = [2, 32], strides = [1, 1]} : vector<2x128xf32> to vector<2x32xf32>
    %cst_89 = arith.constant 2.000000e+00 : f32
    %269 = vector.broadcast %cst_89 : f32 to vector<2x32xf32>
    %270 = arith.mulf %269, %268 : vector<2x32xf32>
    %cst_90 = arith.constant 1.000000e+00 : f32
    %271 = vector.broadcast %cst_90 : f32 to vector<2x32xf32>
    %272 = arith.subf %270, %271 : vector<2x32xf32>
    %273 = arith.mulf %266, %253 : vector<2x32xf32>
    %274 = arith.mulf %265, %272 : vector<2x32xf32>
    %275 = arith.addf %273, %274 : vector<2x32xf32>
    %276 = math.tanh %275 : vector<2x32xf32>
    %277 = arith.mulf %267, %276 : vector<2x32xf32>
    %c4_91 = arith.constant 4 : index
    %c0_92 = arith.constant 0 : index
    %278 = vector.load %arg5[%c4_91, %c0_92] : memref<16x32xf32, #tpu.memory_space<vmem>>, vector<2x32xf32>
    tpu.vector_store %arg5[%c4_91, %c0_92], %277 {strides = array<i32>} : memref<16x32xf32, #tpu.memory_space<vmem>>, vector<2x32xf32>,
    %279 = vector.extract_strided_slice %210 {offsets = [6, 0], sizes = [2, 128], strides = [1, 1]} : vector<16x128xf32> to vector<2x128xf32>
    %cst_93 = arith.constant dense<0.000000e+00> : vector<2x128xf32>
    %280 = tpu.matmul %277, %204, %cst_93 {dimension_numbers = #tpu.dot_dimension_numbers<[1], [0], [0], [1], [0, 0, 1, 1], [], []>} : vector<2x32xf32>, vector<32x128xf32>, vector<2x128xf32> -> vector<2x128xf32>
    %281 = arith.addf %279, %280 : vector<2x128xf32>
    %282 = arith.negf %281 : vector<2x128xf32>
    %283 = math.exp %282 : vector<2x128xf32>
    %cst_94 = arith.constant 1.000000e+00 : f32
    %284 = vector.broadcast %cst_94 : f32 to vector<2x128xf32>
    %285 = arith.addf %284, %283 : vector<2x128xf32>
    %286 = arith.divf %284, %285 : vector<2x128xf32>
    %287 = vector.extract_strided_slice %286 {offsets = [0, 0], sizes = [2, 32], strides = [1, 1]} : vector<2x128xf32> to vector<2x32xf32>
    %288 = vector.extract_strided_slice %286 {offsets = [0, 32], sizes = [2, 32], strides = [1, 1]} : vector<2x128xf32> to vector<2x32xf32>
    %289 = vector.extract_strided_slice %286 {offsets = [0, 96], sizes = [2, 32], strides = [1, 1]} : vector<2x128xf32> to vector<2x32xf32>
    %290 = vector.extract_strided_slice %286 {offsets = [0, 64], sizes = [2, 32], strides = [1, 1]} : vector<2x128xf32> to vector<2x32xf32>
    %cst_95 = arith.constant 2.000000e+00 : f32
    %291 = vector.broadcast %cst_95 : f32 to vector<2x32xf32>
    %292 = arith.mulf %291, %290 : vector<2x32xf32>
    %cst_96 = arith.constant 1.000000e+00 : f32
    %293 = vector.broadcast %cst_96 : f32 to vector<2x32xf32>
    %294 = arith.subf %292, %293 : vector<2x32xf32>
    %295 = arith.mulf %288, %275 : vector<2x32xf32>
    %296 = arith.mulf %287, %294 : vector<2x32xf32>
    %297 = arith.addf %295, %296 : vector<2x32xf32>
    %298 = math.tanh %297 : vector<2x32xf32>
    %299 = arith.mulf %289, %298 : vector<2x32xf32>
    %c6_97 = arith.constant 6 : index
    %c0_98 = arith.constant 0 : index
    %300 = vector.load %arg5[%c6_97, %c0_98] : memref<16x32xf32, #tpu.memory_space<vmem>>, vector<2x32xf32>
    tpu.vector_store %arg5[%c6_97, %c0_98], %299 {strides = array<i32>} : memref<16x32xf32, #tpu.memory_space<vmem>>, vector<2x32xf32>,
    %301 = vector.extract_strided_slice %210 {offsets = [8, 0], sizes = [2, 128], strides = [1, 1]} : vector<16x128xf32> to vector<2x128xf32>
    %cst_99 = arith.constant dense<0.000000e+00> : vector<2x128xf32>
    %302 = tpu.matmul %299, %204, %cst_99 {dimension_numbers = #tpu.dot_dimension_numbers<[1], [0], [0], [1], [0, 0, 1, 1], [], []>} : vector<2x32xf32>, vector<32x128xf32>, vector<2x128xf32> -> vector<2x128xf32>
    %303 = arith.addf %301, %302 : vector<2x128xf32>
    %304 = arith.negf %303 : vector<2x128xf32>
    %305 = math.exp %304 : vector<2x128xf32>
    %cst_100 = arith.constant 1.000000e+00 : f32
    %306 = vector.broadcast %cst_100 : f32 to vector<2x128xf32>
    %307 = arith.addf %306, %305 : vector<2x128xf32>
    %308 = arith.divf %306, %307 : vector<2x128xf32>
    %309 = vector.extract_strided_slice %308 {offsets = [0, 0], sizes = [2, 32], strides = [1, 1]} : vector<2x128xf32> to vector<2x32xf32>
    %310 = vector.extract_strided_slice %308 {offsets = [0, 32], sizes = [2, 32], strides = [1, 1]} : vector<2x128xf32> to vector<2x32xf32>
    %311 = vector.extract_strided_slice %308 {offsets = [0, 96], sizes = [2, 32], strides = [1, 1]} : vector<2x128xf32> to vector<2x32xf32>
    %312 = vector.extract_strided_slice %308 {offsets = [0, 64], sizes = [2, 32], strides = [1, 1]} : vector<2x128xf32> to vector<2x32xf32>
    %cst_101 = arith.constant 2.000000e+00 : f32
    %313 = vector.broadcast %cst_101 : f32 to vector<2x32xf32>
    %314 = arith.mulf %313, %312 : vector<2x32xf32>
    %cst_102 = arith.constant 1.000000e+00 : f32
    %315 = vector.broadcast %cst_102 : f32 to vector<2x32xf32>
    %316 = arith.subf %314, %315 : vector<2x32xf32>
    %317 = arith.mulf %310, %297 : vector<2x32xf32>
    %318 = arith.mulf %309, %316 : vector<2x32xf32>
    %319 = arith.addf %317, %318 : vector<2x32xf32>
    %320 = math.tanh %319 : vector<2x32xf32>
    %321 = arith.mulf %311, %320 : vector<2x32xf32>
    %c8_103 = arith.constant 8 : index
    %c0_104 = arith.constant 0 : index
    %322 = vector.load %arg5[%c8_103, %c0_104] : memref<16x32xf32, #tpu.memory_space<vmem>>, vector<2x32xf32>
    tpu.vector_store %arg5[%c8_103, %c0_104], %321 {strides = array<i32>} : memref<16x32xf32, #tpu.memory_space<vmem>>, vector<2x32xf32>,
    %323 = vector.extract_strided_slice %210 {offsets = [10, 0], sizes = [2, 128], strides = [1, 1]} : vector<16x128xf32> to vector<2x128xf32>
    %cst_105 = arith.constant dense<0.000000e+00> : vector<2x128xf32>
    %324 = tpu.matmul %321, %204, %cst_105 {dimension_numbers = #tpu.dot_dimension_numbers<[1], [0], [0], [1], [0, 0, 1, 1], [], []>} : vector<2x32xf32>, vector<32x128xf32>, vector<2x128xf32> -> vector<2x128xf32>
    %325 = arith.addf %323, %324 : vector<2x128xf32>
    %326 = arith.negf %325 : vector<2x128xf32>
    %327 = math.exp %326 : vector<2x128xf32>
    %cst_106 = arith.constant 1.000000e+00 : f32
    %328 = vector.broadcast %cst_106 : f32 to vector<2x128xf32>
    %329 = arith.addf %328, %327 : vector<2x128xf32>
    %330 = arith.divf %328, %329 : vector<2x128xf32>
    %331 = vector.extract_strided_slice %330 {offsets = [0, 0], sizes = [2, 32], strides = [1, 1]} : vector<2x128xf32> to vector<2x32xf32>
    %332 = vector.extract_strided_slice %330 {offsets = [0, 32], sizes = [2, 32], strides = [1, 1]} : vector<2x128xf32> to vector<2x32xf32>
    %333 = vector.extract_strided_slice %330 {offsets = [0, 96], sizes = [2, 32], strides = [1, 1]} : vector<2x128xf32> to vector<2x32xf32>
    %334 = vector.extract_strided_slice %330 {offsets = [0, 64], sizes = [2, 32], strides = [1, 1]} : vector<2x128xf32> to vector<2x32xf32>
    %cst_107 = arith.constant 2.000000e+00 : f32
    %335 = vector.broadcast %cst_107 : f32 to vector<2x32xf32>
    %336 = arith.mulf %335, %334 : vector<2x32xf32>
    %cst_108 = arith.constant 1.000000e+00 : f32
    %337 = vector.broadcast %cst_108 : f32 to vector<2x32xf32>
    %338 = arith.subf %336, %337 : vector<2x32xf32>
    %339 = arith.mulf %332, %319 : vector<2x32xf32>
    %340 = arith.mulf %331, %338 : vector<2x32xf32>
    %341 = arith.addf %339, %340 : vector<2x32xf32>
    %342 = math.tanh %341 : vector<2x32xf32>
    %343 = arith.mulf %333, %342 : vector<2x32xf32>
    %c10_109 = arith.constant 10 : index
    %c0_110 = arith.constant 0 : index
    %344 = vector.load %arg5[%c10_109, %c0_110] : memref<16x32xf32, #tpu.memory_space<vmem>>, vector<2x32xf32>
    tpu.vector_store %arg5[%c10_109, %c0_110], %343 {strides = array<i32>} : memref<16x32xf32, #tpu.memory_space<vmem>>, vector<2x32xf32>,
    %345 = vector.extract_strided_slice %210 {offsets = [12, 0], sizes = [2, 128], strides = [1, 1]} : vector<16x128xf32> to vector<2x128xf32>
    %cst_111 = arith.constant dense<0.000000e+00> : vector<2x128xf32>
    %346 = tpu.matmul %343, %204, %cst_111 {dimension_numbers = #tpu.dot_dimension_numbers<[1], [0], [0], [1], [0, 0, 1, 1], [], []>} : vector<2x32xf32>, vector<32x128xf32>, vector<2x128xf32> -> vector<2x128xf32>
    %347 = arith.addf %345, %346 : vector<2x128xf32>
    %348 = arith.negf %347 : vector<2x128xf32>
    %349 = math.exp %348 : vector<2x128xf32>
    %cst_112 = arith.constant 1.000000e+00 : f32
    %350 = vector.broadcast %cst_112 : f32 to vector<2x128xf32>
    %351 = arith.addf %350, %349 : vector<2x128xf32>
    %352 = arith.divf %350, %351 : vector<2x128xf32>
    %353 = vector.extract_strided_slice %352 {offsets = [0, 0], sizes = [2, 32], strides = [1, 1]} : vector<2x128xf32> to vector<2x32xf32>
    %354 = vector.extract_strided_slice %352 {offsets = [0, 32], sizes = [2, 32], strides = [1, 1]} : vector<2x128xf32> to vector<2x32xf32>
    %355 = vector.extract_strided_slice %352 {offsets = [0, 96], sizes = [2, 32], strides = [1, 1]} : vector<2x128xf32> to vector<2x32xf32>
    %356 = vector.extract_strided_slice %352 {offsets = [0, 64], sizes = [2, 32], strides = [1, 1]} : vector<2x128xf32> to vector<2x32xf32>
    %cst_113 = arith.constant 2.000000e+00 : f32
    %357 = vector.broadcast %cst_113 : f32 to vector<2x32xf32>
    %358 = arith.mulf %357, %356 : vector<2x32xf32>
    %cst_114 = arith.constant 1.000000e+00 : f32
    %359 = vector.broadcast %cst_114 : f32 to vector<2x32xf32>
    %360 = arith.subf %358, %359 : vector<2x32xf32>
    %361 = arith.mulf %354, %341 : vector<2x32xf32>
    %362 = arith.mulf %353, %360 : vector<2x32xf32>
    %363 = arith.addf %361, %362 : vector<2x32xf32>
    %364 = math.tanh %363 : vector<2x32xf32>
    %365 = arith.mulf %355, %364 : vector<2x32xf32>
    %c12_115 = arith.constant 12 : index
    %c0_116 = arith.constant 0 : index
    %366 = vector.load %arg5[%c12_115, %c0_116] : memref<16x32xf32, #tpu.memory_space<vmem>>, vector<2x32xf32>
    tpu.vector_store %arg5[%c12_115, %c0_116], %365 {strides = array<i32>} : memref<16x32xf32, #tpu.memory_space<vmem>>, vector<2x32xf32>,
    %367 = vector.extract_strided_slice %210 {offsets = [14, 0], sizes = [2, 128], strides = [1, 1]} : vector<16x128xf32> to vector<2x128xf32>
    %cst_117 = arith.constant dense<0.000000e+00> : vector<2x128xf32>
    %368 = tpu.matmul %365, %204, %cst_117 {dimension_numbers = #tpu.dot_dimension_numbers<[1], [0], [0], [1], [0, 0, 1, 1], [], []>} : vector<2x32xf32>, vector<32x128xf32>, vector<2x128xf32> -> vector<2x128xf32>
    %369 = arith.addf %367, %368 : vector<2x128xf32>
    %370 = arith.negf %369 : vector<2x128xf32>
    %371 = math.exp %370 : vector<2x128xf32>
    %cst_118 = arith.constant 1.000000e+00 : f32
    %372 = vector.broadcast %cst_118 : f32 to vector<2x128xf32>
    %373 = arith.addf %372, %371 : vector<2x128xf32>
    %374 = arith.divf %372, %373 : vector<2x128xf32>
    %375 = vector.extract_strided_slice %374 {offsets = [0, 0], sizes = [2, 32], strides = [1, 1]} : vector<2x128xf32> to vector<2x32xf32>
    %376 = vector.extract_strided_slice %374 {offsets = [0, 32], sizes = [2, 32], strides = [1, 1]} : vector<2x128xf32> to vector<2x32xf32>
    %377 = vector.extract_strided_slice %374 {offsets = [0, 96], sizes = [2, 32], strides = [1, 1]} : vector<2x128xf32> to vector<2x32xf32>
    %378 = vector.extract_strided_slice %374 {offsets = [0, 64], sizes = [2, 32], strides = [1, 1]} : vector<2x128xf32> to vector<2x32xf32>
    %cst_119 = arith.constant 2.000000e+00 : f32
    %379 = vector.broadcast %cst_119 : f32 to vector<2x32xf32>
    %380 = arith.mulf %379, %378 : vector<2x32xf32>
    %cst_120 = arith.constant 1.000000e+00 : f32
    %381 = vector.broadcast %cst_120 : f32 to vector<2x32xf32>
    %382 = arith.subf %380, %381 : vector<2x32xf32>
    %383 = arith.mulf %376, %363 : vector<2x32xf32>
    %384 = arith.mulf %375, %382 : vector<2x32xf32>
    %385 = arith.addf %383, %384 : vector<2x32xf32>
    %386 = math.tanh %385 : vector<2x32xf32>
    %387 = arith.mulf %377, %386 : vector<2x32xf32>
    %c14_121 = arith.constant 14 : index
    %c0_122 = arith.constant 0 : index
    %388 = vector.load %arg5[%c14_121, %c0_122] : memref<16x32xf32, #tpu.memory_space<vmem>>, vector<2x32xf32>
    tpu.vector_store %arg5[%c14_121, %c0_122], %387 {strides = array<i32>} : memref<16x32xf32, #tpu.memory_space<vmem>>, vector<2x32xf32>,
    %c1_123 = arith.constant 1 : index
    %c0_124 = arith.constant 0 : index
    %c0_125 = arith.constant 0 : index
    %389 = vector.load %arg6[%c1_123, %c0_124, %c0_125] : memref<2x2x32xf32, #tpu.memory_space<vmem>>, vector<1x2x32xf32>
    %390 = vector.shape_cast %389 : vector<1x2x32xf32> to vector<2x32xf32>
    %391 = vector.shape_cast %387 : vector<2x32xf32> to vector<1x2x32xf32>
    tpu.vector_store %arg6[%c1_123, %c0_124, %c0_125], %391 {strides = array<i32>} : memref<2x2x32xf32, #tpu.memory_space<vmem>>, vector<1x2x32xf32>,
    %c1_126 = arith.constant 1 : index
    %c0_127 = arith.constant 0 : index
    %c0_128 = arith.constant 0 : index
    %392 = vector.load %arg7[%c1_126, %c0_127, %c0_128] : memref<2x2x32xf32, #tpu.memory_space<vmem>>, vector<1x2x32xf32>
    %393 = vector.shape_cast %392 : vector<1x2x32xf32> to vector<2x32xf32>
    %394 = vector.shape_cast %385 : vector<2x32xf32> to vector<1x2x32xf32>
    tpu.vector_store %arg7[%c1_126, %c0_127, %c0_128], %394 {strides = array<i32>} : memref<2x2x32xf32, #tpu.memory_space<vmem>>, vector<1x2x32xf32>,
    return
  }
}

</mosaic_0001>

<llo_original>
// kernel: tpu_custom_call.1
$region0: #{tpu_custom_call.1}
  #allocation0 [shape = 'u32[]', space=smem, size = 0x4, offset = 0x4, fixed_abs, tag = 'smem constant byte address 0x4 - core index']
  #allocation1 [shape = 'u32[144,128]{1,0:T(1,128)}', space=vmem, size = 0x12000, scoped, tag = 'internal scratch']
  #allocation2 [shape = 'f32[16,32]{1,0:T(8,128)}', space=vmem, size = 0x2000, scoped, tag = 'scratch operand']
  %s0 = inlined_call_operand.vmem [shape: s32[16,1], index: 0, kind: input, shape index: {}]
  %s1 = inlined_call_operand.vmem [shape: f32[50,32], index: 1, kind: input, shape index: {}]
  %s2 = inlined_call_operand.vmem [shape: f32[2,32,128], index: 2, kind: input, shape index: {}]
  %s3 = inlined_call_operand.hbm [shape: f32[2,32,128], index: 3, kind: input, shape index: {}]
  %s4 = inlined_call_operand.vmem [shape: f32[2,1,128], index: 4, kind: input, shape index: {}]
  %s5 = inlined_call_operand.hbm [shape: f32[16,32], index: 5, kind: output, shape index: {0}]
  %s6 = inlined_call_operand.hbm [shape: f32[2,2,32], index: 6, kind: output, shape index: {1}]
  %s7 = inlined_call_operand.hbm [shape: f32[2,2,32], index: 7, kind: output, shape index: {2}]
  %8 = xla_tuple %s5, %s6, %s7
  %s9 = sld [smem:[#allocation0]]
  $region50: #{tpu_custom_call.1} parent=0
    _
  %s11 = ssub.s32 1, %s9
  %s12 = scalar_select 0, %s11, %s9
  $region1: #{tpu_custom_call.1} parent=0
    #allocation3 [shape = 'u8[32768]{0}', space=vmem, size = 0x8000, scoped, tag = 'input window, operand 3, single buffered']
    #allocation4 [shape = 's32[1]{0}', space=sflag, size = 0x4, scoped, tag = 'scoped memory for tpu_custom_call.1']
    #allocation5 [shape = 's32[1]{0}', space=sflag, size = 0x4, scoped, tag = 'scoped memory for tpu_custom_call.1']
    #allocation6 [shape = 'u8[8192]{0}', space=vmem, size = 0x2000, scoped, tag = 'output window, operand 0, single buffered']
    #allocation7 [shape = 'u8[2048]{0}', space=vmem, size = 0x800, scoped, tag = 'output window, operand 1, single buffered']
    #allocation8 [shape = 's32[1]{0}', space=sflag, size = 0x4, scoped, tag = 'scoped memory for tpu_custom_call.1']
    #allocation9 [shape = 'u8[2048]{0}', space=vmem, size = 0x800, scoped, tag = 'output window, operand 2, single buffered']
    %13 = vsyncpa [#allocation4], 0
    %14 = vsyncpa [#allocation5], 0
    %15 = vsyncpa [#allocation8], 0
    // Predicated region
    $region2: #{tpu_custom_call.1} parent=1 // pred_check
      _
    $region3: #{tpu_custom_call.1} parent=1 // pred_check_branch
      %17 = sbr.rel (0) target = $region5
    $region4: #{tpu_custom_call.1} parent=1 // pred_region
      _
    $region5: #{tpu_custom_call.1} parent=1 // pred_fallthru
      _
    // Predicated region
    $region6: #{tpu_custom_call.1} parent=1 // pred_check
      _
    $region7: #{tpu_custom_call.1} parent=1 // pred_check_branch
      %19 = sbr.rel (0) target = $region9
    $region8: #{tpu_custom_call.1} parent=1 // pred_region
      _
    $region9: #{tpu_custom_call.1} parent=1 // pred_fallthru
      _
    // Predicated region
    $region10: #{tpu_custom_call.1} parent=1 // pred_check
      _
    $region11: #{tpu_custom_call.1} parent=1 // pred_check_branch
      %21 = sbr.rel (0) target = $region13
    $region12: #{tpu_custom_call.1} parent=1 // pred_region
      _
    $region13: #{tpu_custom_call.1} parent=1 // pred_fallthru
      _
    // Predicated region
    $region14: #{tpu_custom_call.1} parent=1 // pred_check
      _
    $region15: #{tpu_custom_call.1} parent=1 // pred_check_branch
      %23 = sbr.rel (0) target = $region17
    $region16: #{tpu_custom_call.1} parent=1 // pred_region
      %s25 = ssub.s32 1024, 1024
      %26 = vsyncadd [#allocation4], %s25
      %s27 = sshll.u32 [#allocation3], 4
      %s28 = int_to_ptr.vmem [resolvable:$true] %s27
      %33 = dma.hbm_to_vmem [thread:$0]  %s3, 1024, %s28, [#allocation4], 128, 128, 8
    $region17: #{tpu_custom_call.1} parent=1 // pred_fallthru
      _
    // Predicated region
    $region18: #{tpu_custom_call.1} parent=1 // pred_check
      _
    $region19: #{tpu_custom_call.1} parent=1 // pred_check_branch
      %35 = sbr.rel (0) target = $region21
    $region20: #{tpu_custom_call.1} parent=1 // pred_region
      _
    $region21: #{tpu_custom_call.1} parent=1 // pred_fallthru
      _
    // Predicated region
    $region22: #{tpu_custom_call.1} parent=1 // pred_check
      _
    $region23: #{tpu_custom_call.1} parent=1 // pred_check_branch
      %37 = sbr.rel (0) target = $region25
    $region24: #{tpu_custom_call.1} parent=1 // pred_region
      %38 = dma.done [#allocation4], 1024
    $region25: #{tpu_custom_call.1} parent=1 // pred_fallthru
      _
    %v39 = vld [vmem:[%s0] sm:$0xff]
    %v40 = vld [vmem:[%s0 + $0x8] sm:$0xff]
    %v41 = vlaneseq
    %v42 = vand.u32 %v41, 127
    %43 = vset.pattern.permute.xlu0 0
    %44 = vperm.xlu0 %43, %v39
    %v45 = vpop.permute.xlu0 %44
    %46 = vset.pattern.permute.xlu0 0
    %47 = vperm.xlu0 %46, %v40
    %v48 = vpop.permute.xlu0 %47
    %vm49 = vcmp.eq.s32.totalorder %v45, %v42
    %vm50 = vcmp.eq.s32.totalorder %v48, %v42
    %v51 = vsel %vm49, 1, 0
    %v52 = vsel %vm50, 1, 0
    %v53 = vcvt.s32.f32 %v51
    %v54 = vcvt.s32.f32 %v52
    %v55 = vld [vmem:[%s1] sm:$0xff]
    %v56 = vld [vmem:[%s1 + $0x8] sm:$0xff]
    %v57 = vld [vmem:[%s1 + $0x10] sm:$0xff]
    %v58 = vld [vmem:[%s1 + $0x18] sm:$0xff]
    %v59 = vld [vmem:[%s1 + $0x20] sm:$0xff]
    %v60 = vld [vmem:[%s1 + $0x28] sm:$0xff]
    %v61 = vld [vmem:[%s1 + $0x30] sm:$0x3]
    %vm62 = vcmask 408576
    %v64 = vsel %vm62, %v53, 0
    %v67 = vsel %vm62, %v54, 0
    %vm69 = vcmask 1041408
    %v71 = vsel %vm69, %v61, 0
    %73 = vmatprep.subr.mxu0 0.0
    %74 = vmatpush1.msra.mxu0 %v55
    %75 = vmatprep.subr.mxu0 0.0
    %76 = vmatpush1.msra.mxu0 %v56
    %77 = vmatprep.subr.mxu0 0.0
    %78 = vmatpush1.msra.mxu0 %v57
    %79 = vmatprep.subr.mxu0 0.0
    %80 = vmatpush1.msra.mxu0 %v58
    %81 = vmatprep.subr.mxu0 0.0
    %82 = vmatpush1.msra.mxu0 %v59
    %83 = vmatprep.subr.mxu0 0.0
    %84 = vmatpush1.msra.mxu0 %v60
    %85 = vmatprep.subr.mxu0 0.0
    %86 = vmatpush1.msra.mxu0 %v71
    %87 = vmatprep.subr.mxu0 0.0
    %88 = vmatpush1.msra.mxu0 0.0
    %89 = vmatprep.subr.mxu0 0.0
    %90 = vmatpush1.msra.mxu0 0.0
    %91 = vmatprep.subr.mxu0 0.0
    %92 = vmatpush1.msra.mxu0 0.0
    %93 = vmatprep.subr.mxu0 0.0
    %94 = vmatpush1.msra.mxu0 0.0
    %95 = vmatprep.subr.mxu0 0.0
    %96 = vmatpush1.msra.mxu0 0.0
    %97 = vmatprep.subr.mxu0 0.0
    %98 = vmatpush1.msra.mxu0 0.0
    %99 = vmatprep.subr.mxu0 0.0
    %100 = vmatpush1.msra.mxu0 0.0
    %101 = vmatprep.subr.mxu0 0.0
    %102 = vmatpush1.msra.mxu0 0.0
    %103 = vmatprep.subr.mxu0 0.0
    %104 = vmatpush1.msra.mxu0 0.0
    %105 = vmatprep.subr.mxu0 0.0
    %106 = vmatpush1.msra.mxu0 0.0
    %107 = vmatprep.subr.mxu0 0.0
    %108 = vmatpush1.msra.mxu0 0.0
    %109 = vmatprep.subr.mxu0 0.0
    %110 = vmatpush1.msra.mxu0 0.0
    %111 = vmatprep.subr.mxu0 0.0
    %112 = vmatpush1.msra.mxu0 0.0
    %113 = vmatprep.subr.mxu0 0.0
    %114 = vmatpush1.msra.mxu0 0.0
    %115 = vmatprep.subr.mxu0 0.0
    %116 = vmatpush1.msra.mxu0 0.0
    %117 = vmatprep.subr.mxu0 0.0
    %118 = vmatpush1.msra.mxu0 0.0
    %119 = vmatprep.subr.mxu0 0.0
    %120 = vmatpush1.msra.mxu0 0.0
    %121 = vmatprep.subr.mxu0 0.0
    %122 = vmatpush1.msra.mxu0 0.0
    %123 = vmatprep.subr.mxu0 0.0
    %124 = vmatpush1.msra.mxu0 0.0
    %125 = vmatprep.subr.mxu0 0.0
    %126 = vmatpush1.msra.mxu0 0.0
    %127 = vmatprep.subr.mxu0 0.0
    %128 = vmatpush1.msra.mxu0 0.0
    %129 = vmatprep.subr.mxu0 0.0
    %130 = vmatpush1.msra.mxu0 0.0
    %131 = vmatprep.subr.mxu0 0.0
    %132 = vmatpush1.msra.mxu0 0.0
    %133 = vmatprep.subr.mxu0 0.0
    %134 = vmatpush1.msra.mxu0 0.0
    %135 = vmatprep.subr.mxu0 0.0
    %136 = vmatpush1.msra.mxu0 0.0
    %137 = vmatprep.mubr.f32.mxu0 0.0
    %138 = vmatmul.mubr.f32.gmra.mrb[0].mxu0 %v64
    %v139 = vpop.f32.mrb[0].mxu0
    %v140 = vadd.f32 0.0, %v139
    %v141 = vpop.f32.mrb[0].mxu0
    %142 = vmatprep.mubr.f32.mxu0 0.0
    %143 = vmatmul.mubr.f32.gmra.mrb[0].mxu0 %v67
    %v144 = vpop.f32.mrb[0].mxu0
    %v145 = vadd.f32 0.0, %v144
    %v146 = vpop.f32.mrb[0].mxu0
    %147 = vdwg.mxu0
    %v148 = vld [vmem:[%s2] sm:$0xff]
    %v149 = vld [vmem:[%s2 + $0x8] sm:$0xff]
    %v150 = vld [vmem:[%s2 + $0x10] sm:$0xff]
    %v151 = vld [vmem:[%s2 + $0x18] sm:$0xff]
    %v152 = vld [vmem:[#allocation3] sm:$0xff]
    %v153 = vld [vmem:[#allocation3 + $0x8] sm:$0xff]
    %v154 = vld [vmem:[#allocation3 + $0x10] sm:$0xff]
    %v155 = vld [vmem:[#allocation3 + $0x18] sm:$0xff]
    %v156 = vld [vmem:[%s4] sm:$0x1]
    %v158 = vlaneseq
    %v159 = vshrl.u32 %v158, 7
    %v160 = vsub.s32 0, %v159
    %v161 = vrot.slane %v156, %v160
    %vm163 = vcmask 261120
    %v165 = vsel %vm163, %v140, 0
    %v168 = vsel %vm163, %v145, 0
    %170 = vmatprep.subr.mxu0 0.0
    %171 = vmatpush1.msra.mxu0 %v148
    %172 = vmatprep.subr.mxu0 0.0
    %173 = vmatpush1.msra.mxu0 %v149
    %174 = vmatprep.subr.mxu0 0.0
    %175 = vmatpush1.msra.mxu0 %v150
    %176 = vmatprep.subr.mxu0 0.0
    %177 = vmatpush1.msra.mxu0 %v151
    %178 = vmatprep.subr.mxu0 0.0
    %179 = vmatpush1.msra.mxu0 0.0
    %180 = vmatprep.subr.mxu0 0.0
    %181 = vmatpush1.msra.mxu0 0.0
    %182 = vmatprep.subr.mxu0 0.0
    %183 = vmatpush1.msra.mxu0 0.0
    %184 = vmatprep.subr.mxu0 0.0
    %185 = vmatpush1.msra.mxu0 0.0
    %186 = vmatprep.subr.mxu0 0.0
    %187 = vmatpush1.msra.mxu0 0.0
    %188 = vmatprep.subr.mxu0 0.0
    %189 = vmatpush1.msra.mxu0 0.0
    %190 = vmatprep.subr.mxu0 0.0
    %191 = vmatpush1.msra.mxu0 0.0
    %192 = vmatprep.subr.mxu0 0.0
    %193 = vmatpush1.msra.mxu0 0.0
    %194 = vmatprep.subr.mxu0 0.0
    %195 = vmatpush1.msra.mxu0 0.0
    %196 = vmatprep.subr.mxu0 0.0
    %197 = vmatpush1.msra.mxu0 0.0
    %198 = vmatprep.subr.mxu0 0.0
    %199 = vmatpush1.msra.mxu0 0.0
    %200 = vmatprep.subr.mxu0 0.0
    %201 = vmatpush1.msra.mxu0 0.0
    %202 = vmatprep.subr.mxu0 0.0
    %203 = vmatpush1.msra.mxu0 0.0
    %204 = vmatprep.subr.mxu0 0.0
    %205 = vmatpush1.msra.mxu0 0.0
    %206 = vmatprep.subr.mxu0 0.0
    %207 = vmatpush1.msra.mxu0 0.0
    %208 = vmatprep.subr.mxu0 0.0
    %209 = vmatpush1.msra.mxu0 0.0
    %210 = vmatprep.subr.mxu0 0.0
    %211 = vmatpush1.msra.mxu0 0.0
    %212 = vmatprep.subr.mxu0 0.0
    %213 = vmatpush1.msra.mxu0 0.0
    %214 = vmatprep.subr.mxu0 0.0
    %215 = vmatpush1.msra.mxu0 0.0
    %216 = vmatprep.subr.mxu0 0.0
    %217 = vmatpush1.msra.mxu0 0.0
    %218 = vmatprep.subr.mxu0 0.0
    %219 = vmatpush1.msra.mxu0 0.0
    %220 = vmatprep.subr.mxu0 0.0
    %221 = vmatpush1.msra.mxu0 0.0
    %222 = vmatprep.subr.mxu0 0.0
    %223 = vmatpush1.msra.mxu0 0.0
    %224 = vmatprep.subr.mxu0 0.0
    %225 = vmatpush1.msra.mxu0 0.0
    %226 = vmatprep.subr.mxu0 0.0
    %227 = vmatpush1.msra.mxu0 0.0
    %228 = vmatprep.subr.mxu0 0.0
    %229 = vmatpush1.msra.mxu0 0.0
    %230 = vmatprep.subr.mxu0 0.0
    %231 = vmatpush1.msra.mxu0 0.0
    %232 = vmatprep.subr.mxu0 0.0
    %233 = vmatpush1.msra.mxu0 0.0
    %234 = vmatprep.mubr.f32.mxu0 0.0
    %235 = vmatmul.mubr.f32.gmra.mrb[0].mxu0 %v165
    %v236 = vpop.f32.mrb[0].mxu0
    %v237 = vadd.f32 %v161, %v236
    %v238 = vpop.f32.mrb[0].mxu0
    %239 = vmatprep.mubr.f32.mxu0 0.0
    %240 = vmatmul.mubr.f32.gmra.mrb[0].mxu0 %v168
    %v241 = vpop.f32.mrb[0].mxu0
    %v242 = vadd.f32 %v161, %v241
    %v243 = vpop.f32.mrb[0].mxu0
    %244 = vdwg.mxu0
    %v246 = vsel %vm163, 0.0, 0
    %248 = vmatprep.subr.mxu0 0.0
    %249 = vmatpush1.msra.mxu0 %v152
    %250 = vmatprep.subr.mxu0 0.0
    %251 = vmatpush1.msra.mxu0 %v153
    %252 = vmatprep.subr.mxu0 0.0
    %253 = vmatpush1.msra.mxu0 %v154
    %254 = vmatprep.subr.mxu0 0.0
    %255 = vmatpush1.msra.mxu0 %v155
    %256 = vmatprep.subr.mxu0 0.0
    %257 = vmatpush1.msra.mxu0 0.0
    %258 = vmatprep.subr.mxu0 0.0
    %259 = vmatpush1.msra.mxu0 0.0
    %260 = vmatprep.subr.mxu0 0.0
    %261 = vmatpush1.msra.mxu0 0.0
    %262 = vmatprep.subr.mxu0 0.0
    %263 = vmatpush1.msra.mxu0 0.0
    %264 = vmatprep.subr.mxu0 0.0
    %265 = vmatpush1.msra.mxu0 0.0
    %266 = vmatprep.subr.mxu0 0.0
    %267 = vmatpush1.msra.mxu0 0.0
    %268 = vmatprep.subr.mxu0 0.0
    %269 = vmatpush1.msra.mxu0 0.0
    %270 = vmatprep.subr.mxu0 0.0
    %271 = vmatpush1.msra.mxu0 0.0
    %272 = vmatprep.subr.mxu0 0.0
    %273 = vmatpush1.msra.mxu0 0.0
    %274 = vmatprep.subr.mxu0 0.0
    %275 = vmatpush1.msra.mxu0 0.0
    %276 = vmatprep.subr.mxu0 0.0
    %277 = vmatpush1.msra.mxu0 0.0
    %278 = vmatprep.subr.mxu0 0.0
    %279 = vmatpush1.msra.mxu0 0.0
    %280 = vmatprep.subr.mxu0 0.0
    %281 = vmatpush1.msra.mxu0 0.0
    %282 = vmatprep.subr.mxu0 0.0
    %283 = vmatpush1.msra.mxu0 0.0
    %284 = vmatprep.subr.mxu0 0.0
    %285 = vmatpush1.msra.mxu0 0.0
    %286 = vmatprep.subr.mxu0 0.0
    %287 = vmatpush1.msra.mxu0 0.0
    %288 = vmatprep.subr.mxu0 0.0
    %289 = vmatpush1.msra.mxu0 0.0
    %290 = vmatprep.subr.mxu0 0.0
    %291 = vmatpush1.msra.mxu0 0.0
    %292 = vmatprep.subr.mxu0 0.0
    %293 = vmatpush1.msra.mxu0 0.0
    %294 = vmatprep.subr.mxu0 0.0
    %295 = vmatpush1.msra.mxu0 0.0
    %296 = vmatprep.subr.mxu0 0.0
    %297 = vmatpush1.msra.mxu0 0.0
    %298 = vmatprep.subr.mxu0 0.0
    %299 = vmatpush1.msra.mxu0 0.0
    %300 = vmatprep.subr.mxu0 0.0
    %301 = vmatpush1.msra.mxu0 0.0
    %302 = vmatprep.subr.mxu0 0.0
    %303 = vmatpush1.msra.mxu0 0.0
    %304 = vmatprep.subr.mxu0 0.0
    %305 = vmatpush1.msra.mxu0 0.0
    %306 = vmatprep.subr.mxu0 0.0
    %307 = vmatpush1.msra.mxu0 0.0
    %308 = vmatprep.subr.mxu0 0.0
    %309 = vmatpush1.msra.mxu0 0.0
    %310 = vmatprep.subr.mxu0 0.0
    %311 = vmatpush1.msra.mxu0 0.0
    %312 = vmatprep.mubr.f32.mxu0 0.0
    %313 = vmatmul.mubr.f32.gmra.mrb[0].mxu0 %v246
    %v314 = vpop.f32.mrb[0].mxu0
    %v315 = vadd.f32 0.0, %v314
    %v316 = vpop.f32.mrb[0].mxu0
    %317 = vdwg.mxu0
    %v318 = vadd.f32 %v237, %v315
    %v319 = vxor.u32 %v318, 2147483648
    %v320 = vmul.f32 %v319, 1.442695
    %v321 = vpow.pop %v320
    %v322 = vadd.f32 %v321, 1.0
    %v323 = vrcp.pop %v322
    %v324 = vmul.f32 1.0, %v323
    %v325 = vmul.f32 %v324, 2.0
    %v326 = vsub.f32 %v325, 1.0
    %v327 = vmul.f32 %v324, 0.0
    %329 = vrot.lane.b32.xlu0 %v326, 64
    %v330 = vpop.permute.xlu0 %329
    %v332 = vmul.f32 %v324, %v330
    %334 = vrot.lane.b32.xlu0 %v332, 32
    %v335 = vpop.permute.xlu0 %334
    %v337 = vadd.f32 %v327, %v335
    %v338 = vtanh.pop %v337
    %340 = vrot.lane.b32.xlu0 %v338, 64
    %v341 = vpop.permute.xlu0 %340
    %v343 = vmul.f32 %v324, %v341
    %345 = vrot.lane.b32.xlu0 %v343, 32
    %v346 = vpop.permute.xlu0 %345
    %vm348 = vcmask 254976
    %349 = vst.msk [vmem:[#allocation2] sm:$0x3] %vm348, %v346
    %v350 = vsel %vm163, %v346, 0
    %352 = vmatprep.subr.mxu0 0.0
    %353 = vmatpush1.msra.mxu0 %v152
    %354 = vmatprep.subr.mxu0 0.0
    %355 = vmatpush1.msra.mxu0 %v153
    %356 = vmatprep.subr.mxu0 0.0
    %357 = vmatpush1.msra.mxu0 %v154
    %358 = vmatprep.subr.mxu0 0.0
    %359 = vmatpush1.msra.mxu0 %v155
    %360 = vmatprep.subr.mxu0 0.0
    %361 = vmatpush1.msra.mxu0 0.0
    %362 = vmatprep.subr.mxu0 0.0
    %363 = vmatpush1.msra.mxu0 0.0
    %364 = vmatprep.subr.mxu0 0.0
    %365 = vmatpush1.msra.mxu0 0.0
    %366 = vmatprep.subr.mxu0 0.0
    %367 = vmatpush1.msra.mxu0 0.0
    %368 = vmatprep.subr.mxu0 0.0
    %369 = vmatpush1.msra.mxu0 0.0
    %370 = vmatprep.subr.mxu0 0.0
    %371 = vmatpush1.msra.mxu0 0.0
    %372 = vmatprep.subr.mxu0 0.0
    %373 = vmatpush1.msra.mxu0 0.0
    %374 = vmatprep.subr.mxu0 0.0
    %375 = vmatpush1.msra.mxu0 0.0
    %376 = vmatprep.subr.mxu0 0.0
    %377 = vmatpush1.msra.mxu0 0.0
    %378 = vmatprep.subr.mxu0 0.0
    %379 = vmatpush1.msra.mxu0 0.0
    %380 = vmatprep.subr.mxu0 0.0
    %381 = vmatpush1.msra.mxu0 0.0
    %382 = vmatprep.subr.mxu0 0.0
    %383 = vmatpush1.msra.mxu0 0.0
    %384 = vmatprep.subr.mxu0 0.0
    %385 = vmatpush1.msra.mxu0 0.0
    %386 = vmatprep.subr.mxu0 0.0
    %387 = vmatpush1.msra.mxu0 0.0
    %388 = vmatprep.subr.mxu0 0.0
    %389 = vmatpush1.msra.mxu0 0.0
    %390 = vmatprep.subr.mxu0 0.0
    %391 = vmatpush1.msra.mxu0 0.0
    %392 = vmatprep.subr.mxu0 0.0
    %393 = vmatpush1.msra.mxu0 0.0
    %394 = vmatprep.subr.mxu0 0.0
    %395 = vmatpush1.msra.mxu0 0.0
    %396 = vmatprep.subr.mxu0 0.0
    %397 = vmatpush1.msra.mxu0 0.0
    %398 = vmatprep.subr.mxu0 0.0
    %399 = vmatpush1.msra.mxu0 0.0
    %400 = vmatprep.subr.mxu0 0.0
    %401 = vmatpush1.msra.mxu0 0.0
    %402 = vmatprep.subr.mxu0 0.0
    %403 = vmatpush1.msra.mxu0 0.0
    %404 = vmatprep.subr.mxu0 0.0
    %405 = vmatpush1.msra.mxu0 0.0
    %406 = vmatprep.subr.mxu0 0.0
    %407 = vmatpush1.msra.mxu0 0.0
    %408 = vmatprep.subr.mxu0 0.0
    %409 = vmatpush1.msra.mxu0 0.0
    %410 = vmatprep.subr.mxu0 0.0
    %411 = vmatpush1.msra.mxu0 0.0
    %412 = vmatprep.subr.mxu0 0.0
    %413 = vmatpush1.msra.mxu0 0.0
    %414 = vmatprep.subr.mxu0 0.0
    %415 = vmatpush1.msra.mxu0 0.0
    %416 = vmatprep.mubr.f32.mxu0 0.0
    %417 = vmatmul.mubr.f32.gmra.mrb[0].mxu0 %v350
    %v418 = vpop.f32.mrb[0].mxu0
    %v419 = vadd.f32 0.0, %v418
    %v420 = vpop.f32.mrb[0].mxu0
    %421 = vdwg.mxu0
    %v423 = vrot.slane %v419, 6
    %v425 = vadd.f32 %v237, %v423
    %v426 = vxor.u32 %v425, 2147483648
    %v427 = vmul.f32 %v426, 1.442695
    %v428 = vpow.pop %v427
    %v429 = vadd.f32 %v428, 1.0
    %v430 = vrcp.pop %v429
    %v431 = vmul.f32 1.0, %v430
    %v432 = vmul.f32 %v431, 2.0
    %v433 = vsub.f32 %v432, 1.0
    %v435 = vrot.slane %v337, 6
    %v437 = vmul.f32 %v431, %v435
    %439 = vrot.lane.b32.xlu0 %v433, 64
    %v440 = vpop.permute.xlu0 %439
    %v442 = vmul.f32 %v431, %v440
    %444 = vrot.lane.b32.xlu0 %v442, 32
    %v445 = vpop.permute.xlu0 %444
    %v447 = vadd.f32 %v437, %v445
    %v448 = vtanh.pop %v447
    %450 = vrot.lane.b32.xlu0 %v448, 64
    %v451 = vpop.permute.xlu0 %450
    %v453 = vmul.f32 %v431, %v451
    %455 = vrot.lane.b32.xlu0 %v453, 32
    %v456 = vpop.permute.xlu0 %455
    %vm458 = vcmask 257026
    %459 = vst.msk [vmem:[#allocation2] sm:$0xc] %vm458, %v456
    %v460 = vrot.slane %v453, 2
    %461 = vrot.lane.b32.xlu0 %v460, 32
    %v462 = vpop.permute.xlu0 %461
    %v463 = vsel %vm163, %v462, 0
    %465 = vmatprep.subr.mxu0 0.0
    %466 = vmatpush1.msra.mxu0 %v152
    %467 = vmatprep.subr.mxu0 0.0
    %468 = vmatpush1.msra.mxu0 %v153
    %469 = vmatprep.subr.mxu0 0.0
    %470 = vmatpush1.msra.mxu0 %v154
    %471 = vmatprep.subr.mxu0 0.0
    %472 = vmatpush1.msra.mxu0 %v155
    %473 = vmatprep.subr.mxu0 0.0
    %474 = vmatpush1.msra.mxu0 0.0
    %475 = vmatprep.subr.mxu0 0.0
    %476 = vmatpush1.msra.mxu0 0.0
    %477 = vmatprep.subr.mxu0 0.0
    %478 = vmatpush1.msra.mxu0 0.0
    %479 = vmatprep.subr.mxu0 0.0
    %480 = vmatpush1.msra.mxu0 0.0
    %481 = vmatprep.subr.mxu0 0.0
    %482 = vmatpush1.msra.mxu0 0.0
    %483 = vmatprep.subr.mxu0 0.0
    %484 = vmatpush1.msra.mxu0 0.0
    %485 = vmatprep.subr.mxu0 0.0
    %486 = vmatpush1.msra.mxu0 0.0
    %487 = vmatprep.subr.mxu0 0.0
    %488 = vmatpush1.msra.mxu0 0.0
    %489 = vmatprep.subr.mxu0 0.0
    %490 = vmatpush1.msra.mxu0 0.0
    %491 = vmatprep.subr.mxu0 0.0
    %492 = vmatpush1.msra.mxu0 0.0
    %493 = vmatprep.subr.mxu0 0.0
    %494 = vmatpush1.msra.mxu0 0.0
    %495 = vmatprep.subr.mxu0 0.0
    %496 = vmatpush1.msra.mxu0 0.0
    %497 = vmatprep.subr.mxu0 0.0
    %498 = vmatpush1.msra.mxu0 0.0
    %499 = vmatprep.subr.mxu0 0.0
    %500 = vmatpush1.msra.mxu0 0.0
    %501 = vmatprep.subr.mxu0 0.0
    %502 = vmatpush1.msra.mxu0 0.0
    %503 = vmatprep.subr.mxu0 0.0
    %504 = vmatpush1.msra.mxu0 0.0
    %505 = vmatprep.subr.mxu0 0.0
    %506 = vmatpush1.msra.mxu0 0.0
    %507 = vmatprep.subr.mxu0 0.0
    %508 = vmatpush1.msra.mxu0 0.0
    %509 = vmatprep.subr.mxu0 0.0
    %510 = vmatpush1.msra.mxu0 0.0
    %511 = vmatprep.subr.mxu0 0.0
    %512 = vmatpush1.msra.mxu0 0.0
    %513 = vmatprep.subr.mxu0 0.0
    %514 = vmatpush1.msra.mxu0 0.0
    %515 = vmatprep.subr.mxu0 0.0
    %516 = vmatpush1.msra.mxu0 0.0
    %517 = vmatprep.subr.mxu0 0.0
    %518 = vmatpush1.msra.mxu0 0.0
    %519 = vmatprep.subr.mxu0 0.0
    %520 = vmatpush1.msra.mxu0 0.0
    %521 = vmatprep.subr.mxu0 0.0
    %522 = vmatpush1.msra.mxu0 0.0
    %523 = vmatprep.subr.mxu0 0.0
    %524 = vmatpush1.msra.mxu0 0.0
    %525 = vmatprep.subr.mxu0 0.0
    %526 = vmatpush1.msra.mxu0 0.0
    %527 = vmatprep.subr.mxu0 0.0
    %528 = vmatpush1.msra.mxu0 0.0
    %529 = vmatprep.mubr.f32.mxu0 0.0
    %530 = vmatmul.mubr.f32.gmra.mrb[0].mxu0 %v463
    %v531 = vpop.f32.mrb[0].mxu0
    %v532 = vadd.f32 0.0, %v531
    %v533 = vpop.f32.mrb[0].mxu0
    %534 = vdwg.mxu0
    %v536 = vrot.slane %v532, 4
    %v538 = vadd.f32 %v237, %v536
    %v539 = vxor.u32 %v538, 2147483648
    %v540 = vmul.f32 %v539, 1.442695
    %v541 = vpow.pop %v540
    %v542 = vadd.f32 %v541, 1.0
    %v543 = vrcp.pop %v542
    %v544 = vmul.f32 1.0, %v543
    %v545 = vmul.f32 %v544, 2.0
    %v546 = vsub.f32 %v545, 1.0
    %v548 = vrot.slane %v447, 6
    %v550 = vmul.f32 %v544, %v548
    %552 = vrot.lane.b32.xlu0 %v546, 64
    %v553 = vpop.permute.xlu0 %552
    %v555 = vmul.f32 %v544, %v553
    %557 = vrot.lane.b32.xlu0 %v555, 32
    %v558 = vpop.permute.xlu0 %557
    %v560 = vadd.f32 %v550, %v558
    %v561 = vtanh.pop %v560
    %563 = vrot.lane.b32.xlu0 %v561, 64
    %v564 = vpop.permute.xlu0 %563
    %v566 = vmul.f32 %v544, %v564
    %568 = vrot.lane.b32.xlu0 %v566, 32
    %v569 = vpop.permute.xlu0 %568
    %vm571 = vcmask 259076
    %572 = vst.msk [vmem:[#allocation2] sm:$0x30] %vm571, %v569
    %v573 = vrot.slane %v566, 4
    %574 = vrot.lane.b32.xlu0 %v573, 32
    %v575 = vpop.permute.xlu0 %574
    %v576 = vsel %vm163, %v575, 0
    %578 = vmatprep.subr.mxu0 0.0
    %579 = vmatpush1.msra.mxu0 %v152
    %580 = vmatprep.subr.mxu0 0.0
    %581 = vmatpush1.msra.mxu0 %v153
    %582 = vmatprep.subr.mxu0 0.0
    %583 = vmatpush1.msra.mxu0 %v154
    %584 = vmatprep.subr.mxu0 0.0
    %585 = vmatpush1.msra.mxu0 %v155
    %586 = vmatprep.subr.mxu0 0.0
    %587 = vmatpush1.msra.mxu0 0.0
    %588 = vmatprep.subr.mxu0 0.0
    %589 = vmatpush1.msra.mxu0 0.0
    %590 = vmatprep.subr.mxu0 0.0
    %591 = vmatpush1.msra.mxu0 0.0
    %592 = vmatprep.subr.mxu0 0.0
    %593 = vmatpush1.msra.mxu0 0.0
    %594 = vmatprep.subr.mxu0 0.0
    %595 = vmatpush1.msra.mxu0 0.0
    %596 = vmatprep.subr.mxu0 0.0
    %597 = vmatpush1.msra.mxu0 0.0
    %598 = vmatprep.subr.mxu0 0.0
    %599 = vmatpush1.msra.mxu0 0.0
    %600 = vmatprep.subr.mxu0 0.0
    %601 = vmatpush1.msra.mxu0 0.0
    %602 = vmatprep.subr.mxu0 0.0
    %603 = vmatpush1.msra.mxu0 0.0
    %604 = vmatprep.subr.mxu0 0.0
    %605 = vmatpush1.msra.mxu0 0.0
    %606 = vmatprep.subr.mxu0 0.0
    %607 = vmatpush1.msra.mxu0 0.0
    %608 = vmatprep.subr.mxu0 0.0
    %609 = vmatpush1.msra.mxu0 0.0
    %610 = vmatprep.subr.mxu0 0.0
    %611 = vmatpush1.msra.mxu0 0.0
    %612 = vmatprep.subr.mxu0 0.0
    %613 = vmatpush1.msra.mxu0 0.0
    %614 = vmatprep.subr.mxu0 0.0
    %615 = vmatpush1.msra.mxu0 0.0
    %616 = vmatprep.subr.mxu0 0.0
    %617 = vmatpush1.msra.mxu0 0.0
    %618 = vmatprep.subr.mxu0 0.0
    %619 = vmatpush1.msra.mxu0 0.0
    %620 = vmatprep.subr.mxu0 0.0
    %621 = vmatpush1.msra.mxu0 0.0
    %622 = vmatprep.subr.mxu0 0.0
    %623 = vmatpush1.msra.mxu0 0.0
    %624 = vmatprep.subr.mxu0 0.0
    %625 = vmatpush1.msra.mxu0 0.0
    %626 = vmatprep.subr.mxu0 0.0
    %627 = vmatpush1.msra.mxu0 0.0
    %628 = vmatprep.subr.mxu0 0.0
    %629 = vmatpush1.msra.mxu0 0.0
    %630 = vmatprep.subr.mxu0 0.0
    %631 = vmatpush1.msra.mxu0 0.0
    %632 = vmatprep.subr.mxu0 0.0
    %633 = vmatpush1.msra.mxu0 0.0
    %634 = vmatprep.subr.mxu0 0.0
    %635 = vmatpush1.msra.mxu0 0.0
    %636 = vmatprep.subr.mxu0 0.0
    %637 = vmatpush1.msra.mxu0 0.0
    %638 = vmatprep.subr.mxu0 0.0
    %639 = vmatpush1.msra.mxu0 0.0
    %640 = vmatprep.subr.mxu0 0.0
    %641 = vmatpush1.msra.mxu0 0.0
    %642 = vmatprep.mubr.f32.mxu0 0.0
    %643 = vmatmul.mubr.f32.gmra.mrb[0].mxu0 %v576
    %v644 = vpop.f32.mrb[0].mxu0
    %v645 = vadd.f32 0.0, %v644
    %v646 = vpop.f32.mrb[0].mxu0
    %647 = vdwg.mxu0
    %v649 = vrot.slane %v645, 2
    %v651 = vadd.f32 %v237, %v649
    %v652 = vxor.u32 %v651, 2147483648
    %v653 = vmul.f32 %v652, 1.442695
    %v654 = vpow.pop %v653
    %v655 = vadd.f32 %v654, 1.0
    %v656 = vrcp.pop %v655
    %v657 = vmul.f32 1.0, %v656
    %v658 = vmul.f32 %v657, 2.0
    %v659 = vsub.f32 %v658, 1.0
    %v661 = vrot.slane %v560, 6
    %v663 = vmul.f32 %v657, %v661
    %665 = vrot.lane.b32.xlu0 %v659, 64
    %v666 = vpop.permute.xlu0 %665
    %v668 = vmul.f32 %v657, %v666
    %670 = vrot.lane.b32.xlu0 %v668, 32
    %v671 = vpop.permute.xlu0 %670
    %v673 = vadd.f32 %v663, %v671
    %v674 = vtanh.pop %v673
    %676 = vrot.lane.b32.xlu0 %v674, 64
    %v677 = vpop.permute.xlu0 %676
    %v679 = vmul.f32 %v657, %v677
    %681 = vrot.lane.b32.xlu0 %v679, 32
    %v682 = vpop.permute.xlu0 %681
    %vm684 = vcmask 261126
    %685 = vst.msk [vmem:[#allocation2] sm:$0xc0] %vm684, %v682
    %v686 = vrot.slane %v679, 6
    %687 = vrot.lane.b32.xlu0 %v686, 32
    %v688 = vpop.permute.xlu0 %687
    %v689 = vsel %vm163, %v688, 0
    %691 = vmatprep.subr.mxu0 0.0
    %692 = vmatpush1.msra.mxu0 %v152
    %693 = vmatprep.subr.mxu0 0.0
    %694 = vmatpush1.msra.mxu0 %v153
    %695 = vmatprep.subr.mxu0 0.0
    %696 = vmatpush1.msra.mxu0 %v154
    %697 = vmatprep.subr.mxu0 0.0
    %698 = vmatpush1.msra.mxu0 %v155
    %699 = vmatprep.subr.mxu0 0.0
    %700 = vmatpush1.msra.mxu0 0.0
    %701 = vmatprep.subr.mxu0 0.0
    %702 = vmatpush1.msra.mxu0 0.0
    %703 = vmatprep.subr.mxu0 0.0
    %704 = vmatpush1.msra.mxu0 0.0
    %705 = vmatprep.subr.mxu0 0.0
    %706 = vmatpush1.msra.mxu0 0.0
    %707 = vmatprep.subr.mxu0 0.0
    %708 = vmatpush1.msra.mxu0 0.0
    %709 = vmatprep.subr.mxu0 0.0
    %710 = vmatpush1.msra.mxu0 0.0
    %711 = vmatprep.subr.mxu0 0.0
    %712 = vmatpush1.msra.mxu0 0.0
    %713 = vmatprep.subr.mxu0 0.0
    %714 = vmatpush1.msra.mxu0 0.0
    %715 = vmatprep.subr.mxu0 0.0
    %716 = vmatpush1.msra.mxu0 0.0
    %717 = vmatprep.subr.mxu0 0.0
    %718 = vmatpush1.msra.mxu0 0.0
    %719 = vmatprep.subr.mxu0 0.0
    %720 = vmatpush1.msra.mxu0 0.0
    %721 = vmatprep.subr.mxu0 0.0
    %722 = vmatpush1.msra.mxu0 0.0
    %723 = vmatprep.subr.mxu0 0.0
    %724 = vmatpush1.msra.mxu0 0.0
    %725 = vmatprep.subr.mxu0 0.0
    %726 = vmatpush1.msra.mxu0 0.0
    %727 = vmatprep.subr.mxu0 0.0
    %728 = vmatpush1.msra.mxu0 0.0
    %729 = vmatprep.subr.mxu0 0.0
    %730 = vmatpush1.msra.mxu0 0.0
    %731 = vmatprep.subr.mxu0 0.0
    %732 = vmatpush1.msra.mxu0 0.0
    %733 = vmatprep.subr.mxu0 0.0
    %734 = vmatpush1.msra.mxu0 0.0
    %735 = vmatprep.subr.mxu0 0.0
    %736 = vmatpush1.msra.mxu0 0.0
    %737 = vmatprep.subr.mxu0 0.0
    %738 = vmatpush1.msra.mxu0 0.0
    %739 = vmatprep.subr.mxu0 0.0
    %740 = vmatpush1.msra.mxu0 0.0
    %741 = vmatprep.subr.mxu0 0.0
    %742 = vmatpush1.msra.mxu0 0.0
    %743 = vmatprep.subr.mxu0 0.0
    %744 = vmatpush1.msra.mxu0 0.0
    %745 = vmatprep.subr.mxu0 0.0
    %746 = vmatpush1.msra.mxu0 0.0
    %747 = vmatprep.subr.mxu0 0.0
    %748 = vmatpush1.msra.mxu0 0.0
    %749 = vmatprep.subr.mxu0 0.0
    %750 = vmatpush1.msra.mxu0 0.0
    %751 = vmatprep.subr.mxu0 0.0
    %752 = vmatpush1.msra.mxu0 0.0
    %753 = vmatprep.subr.mxu0 0.0
    %754 = vmatpush1.msra.mxu0 0.0
    %755 = vmatprep.mubr.f32.mxu0 0.0
    %756 = vmatmul.mubr.f32.gmra.mrb[0].mxu0 %v689
    %v757 = vpop.f32.mrb[0].mxu0
    %v758 = vadd.f32 0.0, %v757
    %v759 = vpop.f32.mrb[0].mxu0
    %760 = vdwg.mxu0
    %v761 = vadd.f32 %v242, %v758
    %v762 = vxor.u32 %v761, 2147483648
    %v763 = vmul.f32 %v762, 1.442695
    %v764 = vpow.pop %v763
    %v765 = vadd.f32 %v764, 1.0
    %v766 = vrcp.pop %v765
    %v767 = vmul.f32 1.0, %v766
    %v768 = vmul.f32 %v767, 2.0
    %v769 = vsub.f32 %v768, 1.0
    %v771 = vrot.slane %v673, 6
    %v773 = vmul.f32 %v767, %v771
    %775 = vrot.lane.b32.xlu0 %v769, 64
    %v776 = vpop.permute.xlu0 %775
    %v778 = vmul.f32 %v767, %v776
    %780 = vrot.lane.b32.xlu0 %v778, 32
    %v781 = vpop.permute.xlu0 %780
    %v783 = vadd.f32 %v773, %v781
    %v784 = vtanh.pop %v783
    %786 = vrot.lane.b32.xlu0 %v784, 64
    %v787 = vpop.permute.xlu0 %786
    %v789 = vmul.f32 %v767, %v787
    %791 = vrot.lane.b32.xlu0 %v789, 32
    %v792 = vpop.permute.xlu0 %791
    %794 = vst.msk [vmem:[#allocation2 + $0x8] sm:$0x3] %vm348, %v792
    %v795 = vsel %vm163, %v792, 0
    %797 = vmatprep.subr.mxu0 0.0
    %798 = vmatpush1.msra.mxu0 %v152
    %799 = vmatprep.subr.mxu0 0.0
    %800 = vmatpush1.msra.mxu0 %v153
    %801 = vmatprep.subr.mxu0 0.0
    %802 = vmatpush1.msra.mxu0 %v154
    %803 = vmatprep.subr.mxu0 0.0
    %804 = vmatpush1.msra.mxu0 %v155
    %805 = vmatprep.subr.mxu0 0.0
    %806 = vmatpush1.msra.mxu0 0.0
    %807 = vmatprep.subr.mxu0 0.0
    %808 = vmatpush1.msra.mxu0 0.0
    %809 = vmatprep.subr.mxu0 0.0
    %810 = vmatpush1.msra.mxu0 0.0
    %811 = vmatprep.subr.mxu0 0.0
    %812 = vmatpush1.msra.mxu0 0.0
    %813 = vmatprep.subr.mxu0 0.0
    %814 = vmatpush1.msra.mxu0 0.0
    %815 = vmatprep.subr.mxu0 0.0
    %816 = vmatpush1.msra.mxu0 0.0
    %817 = vmatprep.subr.mxu0 0.0
    %818 = vmatpush1.msra.mxu0 0.0
    %819 = vmatprep.subr.mxu0 0.0
    %820 = vmatpush1.msra.mxu0 0.0
    %821 = vmatprep.subr.mxu0 0.0
    %822 = vmatpush1.msra.mxu0 0.0
    %823 = vmatprep.subr.mxu0 0.0
    %824 = vmatpush1.msra.mxu0 0.0
    %825 = vmatprep.subr.mxu0 0.0
    %826 = vmatpush1.msra.mxu0 0.0
    %827 = vmatprep.subr.mxu0 0.0
    %828 = vmatpush1.msra.mxu0 0.0
    %829 = vmatprep.subr.mxu0 0.0
    %830 = vmatpush1.msra.mxu0 0.0
    %831 = vmatprep.subr.mxu0 0.0
    %832 = vmatpush1.msra.mxu0 0.0
    %833 = vmatprep.subr.mxu0 0.0
    %834 = vmatpush1.msra.mxu0 0.0
    %835 = vmatprep.subr.mxu0 0.0
    %836 = vmatpush1.msra.mxu0 0.0
    %837 = vmatprep.subr.mxu0 0.0
    %838 = vmatpush1.msra.mxu0 0.0
    %839 = vmatprep.subr.mxu0 0.0
    %840 = vmatpush1.msra.mxu0 0.0
    %841 = vmatprep.subr.mxu0 0.0
    %842 = vmatpush1.msra.mxu0 0.0
    %843 = vmatprep.subr.mxu0 0.0
    %844 = vmatpush1.msra.mxu0 0.0
    %845 = vmatprep.subr.mxu0 0.0
    %846 = vmatpush1.msra.mxu0 0.0
    %847 = vmatprep.subr.mxu0 0.0
    %848 = vmatpush1.msra.mxu0 0.0
    %849 = vmatprep.subr.mxu0 0.0
    %850 = vmatpush1.msra.mxu0 0.0
    %851 = vmatprep.subr.mxu0 0.0
    %852 = vmatpush1.msra.mxu0 0.0
    %853 = vmatprep.subr.mxu0 0.0
    %854 = vmatpush1.msra.mxu0 0.0
    %855 = vmatprep.subr.mxu0 0.0
    %856 = vmatpush1.msra.mxu0 0.0
    %857 = vmatprep.subr.mxu0 0.0
    %858 = vmatpush1.msra.mxu0 0.0
    %859 = vmatprep.subr.mxu0 0.0
    %860 = vmatpush1.msra.mxu0 0.0
    %861 = vmatprep.mubr.f32.mxu0 0.0
    %862 = vmatmul.mubr.f32.gmra.mrb[0].mxu0 %v795
    %v863 = vpop.f32.mrb[0].mxu0
    %v864 = vadd.f32 0.0, %v863
    %v865 = vpop.f32.mrb[0].mxu0
    %866 = vdwg.mxu0
    %v868 = vrot.slane %v864, 6
    %v870 = vadd.f32 %v242, %v868
    %v871 = vxor.u32 %v870, 2147483648
    %v872 = vmul.f32 %v871, 1.442695
    %v873 = vpow.pop %v872
    %v874 = vadd.f32 %v873, 1.0
    %v875 = vrcp.pop %v874
    %v876 = vmul.f32 1.0, %v875
    %v877 = vmul.f32 %v876, 2.0
    %v878 = vsub.f32 %v877, 1.0
    %v880 = vrot.slane %v783, 6
    %v882 = vmul.f32 %v876, %v880
    %884 = vrot.lane.b32.xlu0 %v878, 64
    %v885 = vpop.permute.xlu0 %884
    %v887 = vmul.f32 %v876, %v885
    %889 = vrot.lane.b32.xlu0 %v887, 32
    %v890 = vpop.permute.xlu0 %889
    %v892 = vadd.f32 %v882, %v890
    %v893 = vtanh.pop %v892
    %895 = vrot.lane.b32.xlu0 %v893, 64
    %v896 = vpop.permute.xlu0 %895
    %v898 = vmul.f32 %v876, %v896
    %900 = vrot.lane.b32.xlu0 %v898, 32
    %v901 = vpop.permute.xlu0 %900
    %903 = vst.msk [vmem:[#allocation2 + $0x8] sm:$0xc] %vm458, %v901
    %v904 = vrot.slane %v898, 2
    %905 = vrot.lane.b32.xlu0 %v904, 32
    %v906 = vpop.permute.xlu0 %905
    %v907 = vsel %vm163, %v906, 0
    %909 = vmatprep.subr.mxu0 0.0
    %910 = vmatpush1.msra.mxu0 %v152
    %911 = vmatprep.subr.mxu0 0.0
    %912 = vmatpush1.msra.mxu0 %v153
    %913 = vmatprep.subr.mxu0 0.0
    %914 = vmatpush1.msra.mxu0 %v154
    %915 = vmatprep.subr.mxu0 0.0
    %916 = vmatpush1.msra.mxu0 %v155
    %917 = vmatprep.subr.mxu0 0.0
    %918 = vmatpush1.msra.mxu0 0.0
    %919 = vmatprep.subr.mxu0 0.0
    %920 = vmatpush1.msra.mxu0 0.0
    %921 = vmatprep.subr.mxu0 0.0
    %922 = vmatpush1.msra.mxu0 0.0
    %923 = vmatprep.subr.mxu0 0.0
    %924 = vmatpush1.msra.mxu0 0.0
    %925 = vmatprep.subr.mxu0 0.0
    %926 = vmatpush1.msra.mxu0 0.0
    %927 = vmatprep.subr.mxu0 0.0
    %928 = vmatpush1.msra.mxu0 0.0
    %929 = vmatprep.subr.mxu0 0.0
    %930 = vmatpush1.msra.mxu0 0.0
    %931 = vmatprep.subr.mxu0 0.0
    %932 = vmatpush1.msra.mxu0 0.0
    %933 = vmatprep.subr.mxu0 0.0
    %934 = vmatpush1.msra.mxu0 0.0
    %935 = vmatprep.subr.mxu0 0.0
    %936 = vmatpush1.msra.mxu0 0.0
    %937 = vmatprep.subr.mxu0 0.0
    %938 = vmatpush1.msra.mxu0 0.0
    %939 = vmatprep.subr.mxu0 0.0
    %940 = vmatpush1.msra.mxu0 0.0
    %941 = vmatprep.subr.mxu0 0.0
    %942 = vmatpush1.msra.mxu0 0.0
    %943 = vmatprep.subr.mxu0 0.0
    %944 = vmatpush1.msra.mxu0 0.0
    %945 = vmatprep.subr.mxu0 0.0
    %946 = vmatpush1.msra.mxu0 0.0
    %947 = vmatprep.subr.mxu0 0.0
    %948 = vmatpush1.msra.mxu0 0.0
    %949 = vmatprep.subr.mxu0 0.0
    %950 = vmatpush1.msra.mxu0 0.0
    %951 = vmatprep.subr.mxu0 0.0
    %952 = vmatpush1.msra.mxu0 0.0
    %953 = vmatprep.subr.mxu0 0.0
    %954 = vmatpush1.msra.mxu0 0.0
    %955 = vmatprep.subr.mxu0 0.0
    %956 = vmatpush1.msra.mxu0 0.0
    %957 = vmatprep.subr.mxu0 0.0
    %958 = vmatpush1.msra.mxu0 0.0
    %959 = vmatprep.subr.mxu0 0.0
    %960 = vmatpush1.msra.mxu0 0.0
    %961 = vmatprep.subr.mxu0 0.0
    %962 = vmatpush1.msra.mxu0 0.0
    %963 = vmatprep.subr.mxu0 0.0
    %964 = vmatpush1.msra.mxu0 0.0
    %965 = vmatprep.subr.mxu0 0.0
    %966 = vmatpush1.msra.mxu0 0.0
    %967 = vmatprep.subr.mxu0 0.0
    %968 = vmatpush1.msra.mxu0 0.0
    %969 = vmatprep.subr.mxu0 0.0
    %970 = vmatpush1.msra.mxu0 0.0
    %971 = vmatprep.subr.mxu0 0.0
    %972 = vmatpush1.msra.mxu0 0.0
    %973 = vmatprep.mubr.f32.mxu0 0.0
    %974 = vmatmul.mubr.f32.gmra.mrb[0].mxu0 %v907
    %v975 = vpop.f32.mrb[0].mxu0
    %v976 = vadd.f32 0.0, %v975
    %v977 = vpop.f32.mrb[0].mxu0
    %978 = vdwg.mxu0
    %v980 = vrot.slane %v976, 4
    %v982 = vadd.f32 %v242, %v980
    %v983 = vxor.u32 %v982, 2147483648
    %v984 = vmul.f32 %v983, 1.442695
    %v985 = vpow.pop %v984
    %v986 = vadd.f32 %v985, 1.0
    %v987 = vrcp.pop %v986
    %v988 = vmul.f32 1.0, %v987
    %v989 = vmul.f32 %v988, 2.0
    %v990 = vsub.f32 %v989, 1.0
    %v992 = vrot.slane %v892, 6
    %v994 = vmul.f32 %v988, %v992
    %996 = vrot.lane.b32.xlu0 %v990, 64
    %v997 = vpop.permute.xlu0 %996
    %v999 = vmul.f32 %v988, %v997
    %1001 = vrot.lane.b32.xlu0 %v999, 32
    %v1002 = vpop.permute.xlu0 %1001
    %v1004 = vadd.f32 %v994, %v1002
    %v1005 = vtanh.pop %v1004
    %1007 = vrot.lane.b32.xlu0 %v1005, 64
    %v1008 = vpop.permute.xlu0 %1007
    %v1010 = vmul.f32 %v988, %v1008
    %1012 = vrot.lane.b32.xlu0 %v1010, 32
    %v1013 = vpop.permute.xlu0 %1012
    %1015 = vst.msk [vmem:[#allocation2 + $0x8] sm:$0x30] %vm571, %v1013
    %v1016 = vrot.slane %v1010, 4
    %1017 = vrot.lane.b32.xlu0 %v1016, 32
    %v1018 = vpop.permute.xlu0 %1017
    %v1019 = vsel %vm163, %v1018, 0
    %1021 = vmatprep.subr.mxu0 0.0
    %1022 = vmatpush1.msra.mxu0 %v152
    %1023 = vmatprep.subr.mxu0 0.0
    %1024 = vmatpush1.msra.mxu0 %v153
    %1025 = vmatprep.subr.mxu0 0.0
    %1026 = vmatpush1.msra.mxu0 %v154
    %1027 = vmatprep.subr.mxu0 0.0
    %1028 = vmatpush1.msra.mxu0 %v155
    %1029 = vmatprep.subr.mxu0 0.0
    %1030 = vmatpush1.msra.mxu0 0.0
    %1031 = vmatprep.subr.mxu0 0.0
    %1032 = vmatpush1.msra.mxu0 0.0
    %1033 = vmatprep.subr.mxu0 0.0
    %1034 = vmatpush1.msra.mxu0 0.0
    %1035 = vmatprep.subr.mxu0 0.0
    %1036 = vmatpush1.msra.mxu0 0.0
    %1037 = vmatprep.subr.mxu0 0.0
    %1038 = vmatpush1.msra.mxu0 0.0
    %1039 = vmatprep.subr.mxu0 0.0
    %1040 = vmatpush1.msra.mxu0 0.0
    %1041 = vmatprep.subr.mxu0 0.0
    %1042 = vmatpush1.msra.mxu0 0.0
    %1043 = vmatprep.subr.mxu0 0.0
    %1044 = vmatpush1.msra.mxu0 0.0
    %1045 = vmatprep.subr.mxu0 0.0
    %1046 = vmatpush1.msra.mxu0 0.0
    %1047 = vmatprep.subr.mxu0 0.0
    %1048 = vmatpush1.msra.mxu0 0.0
    %1049 = vmatprep.subr.mxu0 0.0
    %1050 = vmatpush1.msra.mxu0 0.0
    %1051 = vmatprep.subr.mxu0 0.0
    %1052 = vmatpush1.msra.mxu0 0.0
    %1053 = vmatprep.subr.mxu0 0.0
    %1054 = vmatpush1.msra.mxu0 0.0
    %1055 = vmatprep.subr.mxu0 0.0
    %1056 = vmatpush1.msra.mxu0 0.0
    %1057 = vmatprep.subr.mxu0 0.0
    %1058 = vmatpush1.msra.mxu0 0.0
    %1059 = vmatprep.subr.mxu0 0.0
    %1060 = vmatpush1.msra.mxu0 0.0
    %1061 = vmatprep.subr.mxu0 0.0
    %1062 = vmatpush1.msra.mxu0 0.0
    %1063 = vmatprep.subr.mxu0 0.0
    %1064 = vmatpush1.msra.mxu0 0.0
    %1065 = vmatprep.subr.mxu0 0.0
    %1066 = vmatpush1.msra.mxu0 0.0
    %1067 = vmatprep.subr.mxu0 0.0
    %1068 = vmatpush1.msra.mxu0 0.0
    %1069 = vmatprep.subr.mxu0 0.0
    %1070 = vmatpush1.msra.mxu0 0.0
    %1071 = vmatprep.subr.mxu0 0.0
    %1072 = vmatpush1.msra.mxu0 0.0
    %1073 = vmatprep.subr.mxu0 0.0
    %1074 = vmatpush1.msra.mxu0 0.0
    %1075 = vmatprep.subr.mxu0 0.0
    %1076 = vmatpush1.msra.mxu0 0.0
    %1077 = vmatprep.subr.mxu0 0.0
    %1078 = vmatpush1.msra.mxu0 0.0
    %1079 = vmatprep.subr.mxu0 0.0
    %1080 = vmatpush1.msra.mxu0 0.0
    %1081 = vmatprep.subr.mxu0 0.0
    %1082 = vmatpush1.msra.mxu0 0.0
    %1083 = vmatprep.subr.mxu0 0.0
    %1084 = vmatpush1.msra.mxu0 0.0
    %1085 = vmatprep.mubr.f32.mxu0 0.0
    %1086 = vmatmul.mubr.f32.gmra.mrb[0].mxu0 %v1019
    %v1087 = vpop.f32.mrb[0].mxu0
    %v1088 = vadd.f32 0.0, %v1087
    %v1089 = vpop.f32.mrb[0].mxu0
    %1090 = vdwg.mxu0
    %v1092 = vrot.slane %v1088, 2
    %v1094 = vadd.f32 %v242, %v1092
    %v1095 = vxor.u32 %v1094, 2147483648
    %v1096 = vmul.f32 %v1095, 1.442695
    %v1097 = vpow.pop %v1096
    %v1098 = vadd.f32 %v1097, 1.0
    %v1099 = vrcp.pop %v1098
    %v1100 = vmul.f32 1.0, %v1099
    %v1101 = vmul.f32 %v1100, 2.0
    %v1102 = vsub.f32 %v1101, 1.0
    %v1104 = vrot.slane %v1004, 6
    %v1106 = vmul.f32 %v1100, %v1104
    %1108 = vrot.lane.b32.xlu0 %v1102, 64
    %v1109 = vpop.permute.xlu0 %1108
    %v1111 = vmul.f32 %v1100, %v1109
    %1113 = vrot.lane.b32.xlu0 %v1111, 32
    %v1114 = vpop.permute.xlu0 %1113
    %v1116 = vadd.f32 %v1106, %v1114
    %v1117 = vtanh.pop %v1116
    %1119 = vrot.lane.b32.xlu0 %v1117, 64
    %v1120 = vpop.permute.xlu0 %1119
    %v1122 = vmul.f32 %v1100, %v1120
    %1124 = vrot.lane.b32.xlu0 %v1122, 32
    %v1125 = vpop.permute.xlu0 %1124
    %1127 = vst.msk [vmem:[#allocation2 + $0x8] sm:$0xc0] %vm684, %v1125
    %1128 = vst.msk [vmem:[#allocation7 - $0x6] sm:$0xc0] %vm684, %v1125
    %1130 = vrot.lane.b32.xlu0 %v1116, 96
    %v1131 = vpop.permute.xlu0 %1130
    %1133 = vst.msk [vmem:[#allocation9 - $0x6] sm:$0xc0] %vm684, %v1131
    %s1134 = scalar_lea.vmem %s2, 32
    %v1135 = vld [vmem:[%s1134] sm:$0xff]
    %v1136 = vld [vmem:[%s1134 + $0x8] sm:$0xff]
    %v1137 = vld [vmem:[%s1134 + $0x10] sm:$0xff]
    %v1138 = vld [vmem:[%s1134 + $0x18] sm:$0xff]
    %s1139 = scalar_lea.vmem [#allocation3], 32
    %v1140 = vld [vmem:[%s1139] sm:$0xff]
    %v1141 = vld [vmem:[%s1139 + $0x8] sm:$0xff]
    %v1142 = vld [vmem:[%s1139 + $0x10] sm:$0xff]
    %v1143 = vld [vmem:[%s1139 + $0x18] sm:$0xff]
    %s1144 = scalar_lea.vmem %s4, 1
    %v1145 = vld [vmem:[%s1144] sm:$0x1]
    %v1146 = vld [vmem:[#allocation2] sm:$0xff]
    %v1147 = vld [vmem:[#allocation2 + $0x8] sm:$0xff]
    %v1149 = vlaneseq
    %v1150 = vshrl.u32 %v1149, 7
    %v1151 = vsub.s32 0, %v1150
    %v1152 = vrot.slane %v1145, %v1151
    %v1155 = vsel %vm163, %v1146, 0
    %v1158 = vsel %vm163, %v1147, 0
    %1160 = vmatprep.subr.mxu0 0.0
    %1161 = vmatpush1.msra.mxu0 %v1135
    %1162 = vmatprep.subr.mxu0 0.0
    %1163 = vmatpush1.msra.mxu0 %v1136
    %1164 = vmatprep.subr.mxu0 0.0
    %1165 = vmatpush1.msra.mxu0 %v1137
    %1166 = vmatprep.subr.mxu0 0.0
    %1167 = vmatpush1.msra.mxu0 %v1138
    %1168 = vmatprep.subr.mxu0 0.0
    %1169 = vmatpush1.msra.mxu0 0.0
    %1170 = vmatprep.subr.mxu0 0.0
    %1171 = vmatpush1.msra.mxu0 0.0
    %1172 = vmatprep.subr.mxu0 0.0
    %1173 = vmatpush1.msra.mxu0 0.0
    %1174 = vmatprep.subr.mxu0 0.0
    %1175 = vmatpush1.msra.mxu0 0.0
    %1176 = vmatprep.subr.mxu0 0.0
    %1177 = vmatpush1.msra.mxu0 0.0
    %1178 = vmatprep.subr.mxu0 0.0
    %1179 = vmatpush1.msra.mxu0 0.0
    %1180 = vmatprep.subr.mxu0 0.0
    %1181 = vmatpush1.msra.mxu0 0.0
    %1182 = vmatprep.subr.mxu0 0.0
    %1183 = vmatpush1.msra.mxu0 0.0
    %1184 = vmatprep.subr.mxu0 0.0
    %1185 = vmatpush1.msra.mxu0 0.0
    %1186 = vmatprep.subr.mxu0 0.0
    %1187 = vmatpush1.msra.mxu0 0.0
    %1188 = vmatprep.subr.mxu0 0.0
    %1189 = vmatpush1.msra.mxu0 0.0
    %1190 = vmatprep.subr.mxu0 0.0
    %1191 = vmatpush1.msra.mxu0 0.0
    %1192 = vmatprep.subr.mxu0 0.0
    %1193 = vmatpush1.msra.mxu0 0.0
    %1194 = vmatprep.subr.mxu0 0.0
    %1195 = vmatpush1.msra.mxu0 0.0
    %1196 = vmatprep.subr.mxu0 0.0
    %1197 = vmatpush1.msra.mxu0 0.0
    %1198 = vmatprep.subr.mxu0 0.0
    %1199 = vmatpush1.msra.mxu0 0.0
    %1200 = vmatprep.subr.mxu0 0.0
    %1201 = vmatpush1.msra.mxu0 0.0
    %1202 = vmatprep.subr.mxu0 0.0
    %1203 = vmatpush1.msra.mxu0 0.0
    %1204 = vmatprep.subr.mxu0 0.0
    %1205 = vmatpush1.msra.mxu0 0.0
    %1206 = vmatprep.subr.mxu0 0.0
    %1207 = vmatpush1.msra.mxu0 0.0
    %1208 = vmatprep.subr.mxu0 0.0
    %1209 = vmatpush1.msra.mxu0 0.0
    %1210 = vmatprep.subr.mxu0 0.0
    %1211 = vmatpush1.msra.mxu0 0.0
    %1212 = vmatprep.subr.mxu0 0.0
    %1213 = vmatpush1.msra.mxu0 0.0
    %1214 = vmatprep.subr.mxu0 0.0
    %1215 = vmatpush1.msra.mxu0 0.0
    %1216 = vmatprep.subr.mxu0 0.0
    %1217 = vmatpush1.msra.mxu0 0.0
    %1218 = vmatprep.subr.mxu0 0.0
    %1219 = vmatpush1.msra.mxu0 0.0
    %1220 = vmatprep.subr.mxu0 0.0
    %1221 = vmatpush1.msra.mxu0 0.0
    %1222 = vmatprep.subr.mxu0 0.0
    %1223 = vmatpush1.msra.mxu0 0.0
    %1224 = vmatprep.mubr.f32.mxu0 0.0
    %1225 = vmatmul.mubr.f32.gmra.mrb[0].mxu0 %v1155
    %v1226 = vpop.f32.mrb[0].mxu0
    %v1227 = vadd.f32 %v1152, %v1226
    %v1228 = vpop.f32.mrb[0].mxu0
    %1229 = vmatprep.mubr.f32.mxu0 0.0
    %1230 = vmatmul.mubr.f32.gmra.mrb[0].mxu0 %v1158
    %v1231 = vpop.f32.mrb[0].mxu0
    %v1232 = vadd.f32 %v1152, %v1231
    %v1233 = vpop.f32.mrb[0].mxu0
    %1234 = vdwg.mxu0
    %1235 = vmatprep.subr.mxu0 0.0
    %1236 = vmatpush1.msra.mxu0 %v1140
    %1237 = vmatprep.subr.mxu0 0.0
    %1238 = vmatpush1.msra.mxu0 %v1141
    %1239 = vmatprep.subr.mxu0 0.0
    %1240 = vmatpush1.msra.mxu0 %v1142
    %1241 = vmatprep.subr.mxu0 0.0
    %1242 = vmatpush1.msra.mxu0 %v1143
    %1243 = vmatprep.subr.mxu0 0.0
    %1244 = vmatpush1.msra.mxu0 0.0
    %1245 = vmatprep.subr.mxu0 0.0
    %1246 = vmatpush1.msra.mxu0 0.0
    %1247 = vmatprep.subr.mxu0 0.0
    %1248 = vmatpush1.msra.mxu0 0.0
    %1249 = vmatprep.subr.mxu0 0.0
    %1250 = vmatpush1.msra.mxu0 0.0
    %1251 = vmatprep.subr.mxu0 0.0
    %1252 = vmatpush1.msra.mxu0 0.0
    %1253 = vmatprep.subr.mxu0 0.0
    %1254 = vmatpush1.msra.mxu0 0.0
    %1255 = vmatprep.subr.mxu0 0.0
    %1256 = vmatpush1.msra.mxu0 0.0
    %1257 = vmatprep.subr.mxu0 0.0
    %1258 = vmatpush1.msra.mxu0 0.0
    %1259 = vmatprep.subr.mxu0 0.0
    %1260 = vmatpush1.msra.mxu0 0.0
    %1261 = vmatprep.subr.mxu0 0.0
    %1262 = vmatpush1.msra.mxu0 0.0
    %1263 = vmatprep.subr.mxu0 0.0
    %1264 = vmatpush1.msra.mxu0 0.0
    %1265 = vmatprep.subr.mxu0 0.0
    %1266 = vmatpush1.msra.mxu0 0.0
    %1267 = vmatprep.subr.mxu0 0.0
    %1268 = vmatpush1.msra.mxu0 0.0
    %1269 = vmatprep.subr.mxu0 0.0
    %1270 = vmatpush1.msra.mxu0 0.0
    %1271 = vmatprep.subr.mxu0 0.0
    %1272 = vmatpush1.msra.mxu0 0.0
    %1273 = vmatprep.subr.mxu0 0.0
    %1274 = vmatpush1.msra.mxu0 0.0
    %1275 = vmatprep.subr.mxu0 0.0
    %1276 = vmatpush1.msra.mxu0 0.0
    %1277 = vmatprep.subr.mxu0 0.0
    %1278 = vmatpush1.msra.mxu0 0.0
    %1279 = vmatprep.subr.mxu0 0.0
    %1280 = vmatpush1.msra.mxu0 0.0
    %1281 = vmatprep.subr.mxu0 0.0
    %1282 = vmatpush1.msra.mxu0 0.0
    %1283 = vmatprep.subr.mxu0 0.0
    %1284 = vmatpush1.msra.mxu0 0.0
    %1285 = vmatprep.subr.mxu0 0.0
    %1286 = vmatpush1.msra.mxu0 0.0
    %1287 = vmatprep.subr.mxu0 0.0
    %1288 = vmatpush1.msra.mxu0 0.0
    %1289 = vmatprep.subr.mxu0 0.0
    %1290 = vmatpush1.msra.mxu0 0.0
    %1291 = vmatprep.subr.mxu0 0.0
    %1292 = vmatpush1.msra.mxu0 0.0
    %1293 = vmatprep.subr.mxu0 0.0
    %1294 = vmatpush1.msra.mxu0 0.0
    %1295 = vmatprep.subr.mxu0 0.0
    %1296 = vmatpush1.msra.mxu0 0.0
    %1297 = vmatprep.subr.mxu0 0.0
    %1298 = vmatpush1.msra.mxu0 0.0
    %1299 = vmatprep.mubr.f32.mxu0 0.0
    %1300 = vmatmul.mubr.f32.gmra.mrb[0].mxu0 %v246
    %v1301 = vpop.f32.mrb[0].mxu0
    %v1302 = vadd.f32 0.0, %v1301
    %v1303 = vpop.f32.mrb[0].mxu0
    %1304 = vdwg.mxu0
    %v1305 = vadd.f32 %v1227, %v1302
    %v1306 = vxor.u32 %v1305, 2147483648
    %v1307 = vmul.f32 %v1306, 1.442695
    %v1308 = vpow.pop %v1307
    %v1309 = vadd.f32 %v1308, 1.0
    %v1310 = vrcp.pop %v1309
    %v1311 = vmul.f32 1.0, %v1310
    %v1312 = vmul.f32 %v1311, 2.0
    %v1313 = vsub.f32 %v1312, 1.0
    %v1314 = vmul.f32 %v1311, 0.0
    %1316 = vrot.lane.b32.xlu0 %v1313, 64
    %v1317 = vpop.permute.xlu0 %1316
    %v1319 = vmul.f32 %v1311, %v1317
    %1321 = vrot.lane.b32.xlu0 %v1319, 32
    %v1322 = vpop.permute.xlu0 %1321
    %v1324 = vadd.f32 %v1314, %v1322
    %v1325 = vtanh.pop %v1324
    %1327 = vrot.lane.b32.xlu0 %v1325, 64
    %v1328 = vpop.permute.xlu0 %1327
    %v1330 = vmul.f32 %v1311, %v1328
    %1332 = vrot.lane.b32.xlu0 %v1330, 32
    %v1333 = vpop.permute.xlu0 %1332
    %1335 = vst.msk [vmem:[#allocation6] sm:$0x3] %vm348, %v1333
    %v1336 = vsel %vm163, %v1333, 0
    %1338 = vmatprep.subr.mxu0 0.0
    %1339 = vmatpush1.msra.mxu0 %v1140
    %1340 = vmatprep.subr.mxu0 0.0
    %1341 = vmatpush1.msra.mxu0 %v1141
    %1342 = vmatprep.subr.mxu0 0.0
    %1343 = vmatpush1.msra.mxu0 %v1142
    %1344 = vmatprep.subr.mxu0 0.0
    %1345 = vmatpush1.msra.mxu0 %v1143
    %1346 = vmatprep.subr.mxu0 0.0
    %1347 = vmatpush1.msra.mxu0 0.0
    %1348 = vmatprep.subr.mxu0 0.0
    %1349 = vmatpush1.msra.mxu0 0.0
    %1350 = vmatprep.subr.mxu0 0.0
    %1351 = vmatpush1.msra.mxu0 0.0
    %1352 = vmatprep.subr.mxu0 0.0
    %1353 = vmatpush1.msra.mxu0 0.0
    %1354 = vmatprep.subr.mxu0 0.0
    %1355 = vmatpush1.msra.mxu0 0.0
    %1356 = vmatprep.subr.mxu0 0.0
    %1357 = vmatpush1.msra.mxu0 0.0
    %1358 = vmatprep.subr.mxu0 0.0
    %1359 = vmatpush1.msra.mxu0 0.0
    %1360 = vmatprep.subr.mxu0 0.0
    %1361 = vmatpush1.msra.mxu0 0.0
    %1362 = vmatprep.subr.mxu0 0.0
    %1363 = vmatpush1.msra.mxu0 0.0
    %1364 = vmatprep.subr.mxu0 0.0
    %1365 = vmatpush1.msra.mxu0 0.0
    %1366 = vmatprep.subr.mxu0 0.0
    %1367 = vmatpush1.msra.mxu0 0.0
    %1368 = vmatprep.subr.mxu0 0.0
    %1369 = vmatpush1.msra.mxu0 0.0
    %1370 = vmatprep.subr.mxu0 0.0
    %1371 = vmatpush1.msra.mxu0 0.0
    %1372 = vmatprep.subr.mxu0 0.0
    %1373 = vmatpush1.msra.mxu0 0.0
    %1374 = vmatprep.subr.mxu0 0.0
    %1375 = vmatpush1.msra.mxu0 0.0
    %1376 = vmatprep.subr.mxu0 0.0
    %1377 = vmatpush1.msra.mxu0 0.0
    %1378 = vmatprep.subr.mxu0 0.0
    %1379 = vmatpush1.msra.mxu0 0.0
    %1380 = vmatprep.subr.mxu0 0.0
    %1381 = vmatpush1.msra.mxu0 0.0
    %1382 = vmatprep.subr.mxu0 0.0
    %1383 = vmatpush1.msra.mxu0 0.0
    %1384 = vmatprep.subr.mxu0 0.0
    %1385 = vmatpush1.msra.mxu0 0.0
    %1386 = vmatprep.subr.mxu0 0.0
    %1387 = vmatpush1.msra.mxu0 0.0
    %1388 = vmatprep.subr.mxu0 0.0
    %1389 = vmatpush1.msra.mxu0 0.0
    %1390 = vmatprep.subr.mxu0 0.0
    %1391 = vmatpush1.msra.mxu0 0.0
    %1392 = vmatprep.subr.mxu0 0.0
    %1393 = vmatpush1.msra.mxu0 0.0
    %1394 = vmatprep.subr.mxu0 0.0
    %1395 = vmatpush1.msra.mxu0 0.0
    %1396 = vmatprep.subr.mxu0 0.0
    %1397 = vmatpush1.msra.mxu0 0.0
    %1398 = vmatprep.subr.mxu0 0.0
    %1399 = vmatpush1.msra.mxu0 0.0
    %1400 = vmatprep.subr.mxu0 0.0
    %1401 = vmatpush1.msra.mxu0 0.0
    %1402 = vmatprep.mubr.f32.mxu0 0.0
    %1403 = vmatmul.mubr.f32.gmra.mrb[0].mxu0 %v1336
    %v1404 = vpop.f32.mrb[0].mxu0
    %v1405 = vadd.f32 0.0, %v1404
    %v1406 = vpop.f32.mrb[0].mxu0
    %1407 = vdwg.mxu0
    %v1409 = vrot.slane %v1405, 6
    %v1411 = vadd.f32 %v1227, %v1409
    %v1412 = vxor.u32 %v1411, 2147483648
    %v1413 = vmul.f32 %v1412, 1.442695
    %v1414 = vpow.pop %v1413
    %v1415 = vadd.f32 %v1414, 1.0
    %v1416 = vrcp.pop %v1415
    %v1417 = vmul.f32 1.0, %v1416
    %v1418 = vmul.f32 %v1417, 2.0
    %v1419 = vsub.f32 %v1418, 1.0
    %v1421 = vrot.slane %v1324, 6
    %v1423 = vmul.f32 %v1417, %v1421
    %1425 = vrot.lane.b32.xlu0 %v1419, 64
    %v1426 = vpop.permute.xlu0 %1425
    %v1428 = vmul.f32 %v1417, %v1426
    %1430 = vrot.lane.b32.xlu0 %v1428, 32
    %v1431 = vpop.permute.xlu0 %1430
    %v1433 = vadd.f32 %v1423, %v1431
    %v1434 = vtanh.pop %v1433
    %1436 = vrot.lane.b32.xlu0 %v1434, 64
    %v1437 = vpop.permute.xlu0 %1436
    %v1439 = vmul.f32 %v1417, %v1437
    %1441 = vrot.lane.b32.xlu0 %v1439, 32
    %v1442 = vpop.permute.xlu0 %1441
    %1444 = vst.msk [vmem:[#allocation6] sm:$0xc] %vm458, %v1442
    %v1445 = vrot.slane %v1439, 2
    %1446 = vrot.lane.b32.xlu0 %v1445, 32
    %v1447 = vpop.permute.xlu0 %1446
    %v1448 = vsel %vm163, %v1447, 0
    %1450 = vmatprep.subr.mxu0 0.0
    %1451 = vmatpush1.msra.mxu0 %v1140
    %1452 = vmatprep.subr.mxu0 0.0
    %1453 = vmatpush1.msra.mxu0 %v1141
    %1454 = vmatprep.subr.mxu0 0.0
    %1455 = vmatpush1.msra.mxu0 %v1142
    %1456 = vmatprep.subr.mxu0 0.0
    %1457 = vmatpush1.msra.mxu0 %v1143
    %1458 = vmatprep.subr.mxu0 0.0
    %1459 = vmatpush1.msra.mxu0 0.0
    %1460 = vmatprep.subr.mxu0 0.0
    %1461 = vmatpush1.msra.mxu0 0.0
    %1462 = vmatprep.subr.mxu0 0.0
    %1463 = vmatpush1.msra.mxu0 0.0
    %1464 = vmatprep.subr.mxu0 0.0
    %1465 = vmatpush1.msra.mxu0 0.0
    %1466 = vmatprep.subr.mxu0 0.0
    %1467 = vmatpush1.msra.mxu0 0.0
    %1468 = vmatprep.subr.mxu0 0.0
    %1469 = vmatpush1.msra.mxu0 0.0
    %1470 = vmatprep.subr.mxu0 0.0
    %1471 = vmatpush1.msra.mxu0 0.0
    %1472 = vmatprep.subr.mxu0 0.0
    %1473 = vmatpush1.msra.mxu0 0.0
    %1474 = vmatprep.subr.mxu0 0.0
    %1475 = vmatpush1.msra.mxu0 0.0
    %1476 = vmatprep.subr.mxu0 0.0
    %1477 = vmatpush1.msra.mxu0 0.0
    %1478 = vmatprep.subr.mxu0 0.0
    %1479 = vmatpush1.msra.mxu0 0.0
    %1480 = vmatprep.subr.mxu0 0.0
    %1481 = vmatpush1.msra.mxu0 0.0
    %1482 = vmatprep.subr.mxu0 0.0
    %1483 = vmatpush1.msra.mxu0 0.0
    %1484 = vmatprep.subr.mxu0 0.0
    %1485 = vmatpush1.msra.mxu0 0.0
    %1486 = vmatprep.subr.mxu0 0.0
    %1487 = vmatpush1.msra.mxu0 0.0
    %1488 = vmatprep.subr.mxu0 0.0
    %1489 = vmatpush1.msra.mxu0 0.0
    %1490 = vmatprep.subr.mxu0 0.0
    %1491 = vmatpush1.msra.mxu0 0.0
    %1492 = vmatprep.subr.mxu0 0.0
    %1493 = vmatpush1.msra.mxu0 0.0
    %1494 = vmatprep.subr.mxu0 0.0
    %1495 = vmatpush1.msra.mxu0 0.0
    %1496 = vmatprep.subr.mxu0 0.0
    %1497 = vmatpush1.msra.mxu0 0.0
    %1498 = vmatprep.subr.mxu0 0.0
    %1499 = vmatpush1.msra.mxu0 0.0
    %1500 = vmatprep.subr.mxu0 0.0
    %1501 = vmatpush1.msra.mxu0 0.0
    %1502 = vmatprep.subr.mxu0 0.0
    %1503 = vmatpush1.msra.mxu0 0.0
    %1504 = vmatprep.subr.mxu0 0.0
    %1505 = vmatpush1.msra.mxu0 0.0
    %1506 = vmatprep.subr.mxu0 0.0
    %1507 = vmatpush1.msra.mxu0 0.0
    %1508 = vmatprep.subr.mxu0 0.0
    %1509 = vmatpush1.msra.mxu0 0.0
    %1510 = vmatprep.subr.mxu0 0.0
    %1511 = vmatpush1.msra.mxu0 0.0
    %1512 = vmatprep.subr.mxu0 0.0
    %1513 = vmatpush1.msra.mxu0 0.0
    %1514 = vmatprep.mubr.f32.mxu0 0.0
    %1515 = vmatmul.mubr.f32.gmra.mrb[0].mxu0 %v1448
    %v1516 = vpop.f32.mrb[0].mxu0
    %v1517 = vadd.f32 0.0, %v1516
    %v1518 = vpop.f32.mrb[0].mxu0
    %1519 = vdwg.mxu0
    %v1521 = vrot.slane %v1517, 4
    %v1523 = vadd.f32 %v1227, %v1521
    %v1524 = vxor.u32 %v1523, 2147483648
    %v1525 = vmul.f32 %v1524, 1.442695
    %v1526 = vpow.pop %v1525
    %v1527 = vadd.f32 %v1526, 1.0
    %v1528 = vrcp.pop %v1527
    %v1529 = vmul.f32 1.0, %v1528
    %v1530 = vmul.f32 %v1529, 2.0
    %v1531 = vsub.f32 %v1530, 1.0
    %v1533 = vrot.slane %v1433, 6
    %v1535 = vmul.f32 %v1529, %v1533
    %1537 = vrot.lane.b32.xlu0 %v1531, 64
    %v1538 = vpop.permute.xlu0 %1537
    %v1540 = vmul.f32 %v1529, %v1538
    %1542 = vrot.lane.b32.xlu0 %v1540, 32
    %v1543 = vpop.permute.xlu0 %1542
    %v1545 = vadd.f32 %v1535, %v1543
    %v1546 = vtanh.pop %v1545
    %1548 = vrot.lane.b32.xlu0 %v1546, 64
    %v1549 = vpop.permute.xlu0 %1548
    %v1551 = vmul.f32 %v1529, %v1549
    %1553 = vrot.lane.b32.xlu0 %v1551, 32
    %v1554 = vpop.permute.xlu0 %1553
    %1556 = vst.msk [vmem:[#allocation6] sm:$0x30] %vm571, %v1554
    %v1557 = vrot.slane %v1551, 4
    %1558 = vrot.lane.b32.xlu0 %v1557, 32
    %v1559 = vpop.permute.xlu0 %1558
    %v1560 = vsel %vm163, %v1559, 0
    %1562 = vmatprep.subr.mxu0 0.0
    %1563 = vmatpush1.msra.mxu0 %v1140
    %1564 = vmatprep.subr.mxu0 0.0
    %1565 = vmatpush1.msra.mxu0 %v1141
    %1566 = vmatprep.subr.mxu0 0.0
    %1567 = vmatpush1.msra.mxu0 %v1142
    %1568 = vmatprep.subr.mxu0 0.0
    %1569 = vmatpush1.msra.mxu0 %v1143
    %1570 = vmatprep.subr.mxu0 0.0
    %1571 = vmatpush1.msra.mxu0 0.0
    %1572 = vmatprep.subr.mxu0 0.0
    %1573 = vmatpush1.msra.mxu0 0.0
    %1574 = vmatprep.subr.mxu0 0.0
    %1575 = vmatpush1.msra.mxu0 0.0
    %1576 = vmatprep.subr.mxu0 0.0
    %1577 = vmatpush1.msra.mxu0 0.0
    %1578 = vmatprep.subr.mxu0 0.0
    %1579 = vmatpush1.msra.mxu0 0.0
    %1580 = vmatprep.subr.mxu0 0.0
    %1581 = vmatpush1.msra.mxu0 0.0
    %1582 = vmatprep.subr.mxu0 0.0
    %1583 = vmatpush1.msra.mxu0 0.0
    %1584 = vmatprep.subr.mxu0 0.0
    %1585 = vmatpush1.msra.mxu0 0.0
    %1586 = vmatprep.subr.mxu0 0.0
    %1587 = vmatpush1.msra.mxu0 0.0
    %1588 = vmatprep.subr.mxu0 0.0
    %1589 = vmatpush1.msra.mxu0 0.0
    %1590 = vmatprep.subr.mxu0 0.0
    %1591 = vmatpush1.msra.mxu0 0.0
    %1592 = vmatprep.subr.mxu0 0.0
    %1593 = vmatpush1.msra.mxu0 0.0
    %1594 = vmatprep.subr.mxu0 0.0
    %1595 = vmatpush1.msra.mxu0 0.0
    %1596 = vmatprep.subr.mxu0 0.0
    %1597 = vmatpush1.msra.mxu0 0.0
    %1598 = vmatprep.subr.mxu0 0.0
    %1599 = vmatpush1.msra.mxu0 0.0
    %1600 = vmatprep.subr.mxu0 0.0
    %1601 = vmatpush1.msra.mxu0 0.0
    %1602 = vmatprep.subr.mxu0 0.0
    %1603 = vmatpush1.msra.mxu0 0.0
    %1604 = vmatprep.subr.mxu0 0.0
    %1605 = vmatpush1.msra.mxu0 0.0
    %1606 = vmatprep.subr.mxu0 0.0
    %1607 = vmatpush1.msra.mxu0 0.0
    %1608 = vmatprep.subr.mxu0 0.0
    %1609 = vmatpush1.msra.mxu0 0.0
    %1610 = vmatprep.subr.mxu0 0.0
    %1611 = vmatpush1.msra.mxu0 0.0
    %1612 = vmatprep.subr.mxu0 0.0
    %1613 = vmatpush1.msra.mxu0 0.0
    %1614 = vmatprep.subr.mxu0 0.0
    %1615 = vmatpush1.msra.mxu0 0.0
    %1616 = vmatprep.subr.mxu0 0.0
    %1617 = vmatpush1.msra.mxu0 0.0
    %1618 = vmatprep.subr.mxu0 0.0
    %1619 = vmatpush1.msra.mxu0 0.0
    %1620 = vmatprep.subr.mxu0 0.0
    %1621 = vmatpush1.msra.mxu0 0.0
    %1622 = vmatprep.subr.mxu0 0.0
    %1623 = vmatpush1.msra.mxu0 0.0
    %1624 = vmatprep.subr.mxu0 0.0
    %1625 = vmatpush1.msra.mxu0 0.0
    %1626 = vmatprep.mubr.f32.mxu0 0.0
    %1627 = vmatmul.mubr.f32.gmra.mrb[0].mxu0 %v1560
    %v1628 = vpop.f32.mrb[0].mxu0
    %v1629 = vadd.f32 0.0, %v1628
    %v1630 = vpop.f32.mrb[0].mxu0
    %1631 = vdwg.mxu0
    %v1633 = vrot.slane %v1629, 2
    %v1635 = vadd.f32 %v1227, %v1633
    %v1636 = vxor.u32 %v1635, 2147483648
    %v1637 = vmul.f32 %v1636, 1.442695
    %v1638 = vpow.pop %v1637
    %v1639 = vadd.f32 %v1638, 1.0
    %v1640 = vrcp.pop %v1639
    %v1641 = vmul.f32 1.0, %v1640
    %v1642 = vmul.f32 %v1641, 2.0
    %v1643 = vsub.f32 %v1642, 1.0
    %v1645 = vrot.slane %v1545, 6
    %v1647 = vmul.f32 %v1641, %v1645
    %1649 = vrot.lane.b32.xlu0 %v1643, 64
    %v1650 = vpop.permute.xlu0 %1649
    %v1652 = vmul.f32 %v1641, %v1650
    %1654 = vrot.lane.b32.xlu0 %v1652, 32
    %v1655 = vpop.permute.xlu0 %1654
    %v1657 = vadd.f32 %v1647, %v1655
    %v1658 = vtanh.pop %v1657
    %1660 = vrot.lane.b32.xlu0 %v1658, 64
    %v1661 = vpop.permute.xlu0 %1660
    %v1663 = vmul.f32 %v1641, %v1661
    %1665 = vrot.lane.b32.xlu0 %v1663, 32
    %v1666 = vpop.permute.xlu0 %1665
    %1668 = vst.msk [vmem:[#allocation6] sm:$0xc0] %vm684, %v1666
    %v1669 = vrot.slane %v1663, 6
    %1670 = vrot.lane.b32.xlu0 %v1669, 32
    %v1671 = vpop.permute.xlu0 %1670
    %v1672 = vsel %vm163, %v1671, 0
    %1674 = vmatprep.subr.mxu0 0.0
    %1675 = vmatpush1.msra.mxu0 %v1140
    %1676 = vmatprep.subr.mxu0 0.0
    %1677 = vmatpush1.msra.mxu0 %v1141
    %1678 = vmatprep.subr.mxu0 0.0
    %1679 = vmatpush1.msra.mxu0 %v1142
    %1680 = vmatprep.subr.mxu0 0.0
    %1681 = vmatpush1.msra.mxu0 %v1143
    %1682 = vmatprep.subr.mxu0 0.0
    %1683 = vmatpush1.msra.mxu0 0.0
    %1684 = vmatprep.subr.mxu0 0.0
    %1685 = vmatpush1.msra.mxu0 0.0
    %1686 = vmatprep.subr.mxu0 0.0
    %1687 = vmatpush1.msra.mxu0 0.0
    %1688 = vmatprep.subr.mxu0 0.0
    %1689 = vmatpush1.msra.mxu0 0.0
    %1690 = vmatprep.subr.mxu0 0.0
    %1691 = vmatpush1.msra.mxu0 0.0
    %1692 = vmatprep.subr.mxu0 0.0
    %1693 = vmatpush1.msra.mxu0 0.0
    %1694 = vmatprep.subr.mxu0 0.0
    %1695 = vmatpush1.msra.mxu0 0.0
    %1696 = vmatprep.subr.mxu0 0.0
    %1697 = vmatpush1.msra.mxu0 0.0
    %1698 = vmatprep.subr.mxu0 0.0
    %1699 = vmatpush1.msra.mxu0 0.0
    %1700 = vmatprep.subr.mxu0 0.0
    %1701 = vmatpush1.msra.mxu0 0.0
    %1702 = vmatprep.subr.mxu0 0.0
    %1703 = vmatpush1.msra.mxu0 0.0
    %1704 = vmatprep.subr.mxu0 0.0
    %1705 = vmatpush1.msra.mxu0 0.0
    %1706 = vmatprep.subr.mxu0 0.0
    %1707 = vmatpush1.msra.mxu0 0.0
    %1708 = vmatprep.subr.mxu0 0.0
    %1709 = vmatpush1.msra.mxu0 0.0
    %1710 = vmatprep.subr.mxu0 0.0
    %1711 = vmatpush1.msra.mxu0 0.0
    %1712 = vmatprep.subr.mxu0 0.0
    %1713 = vmatpush1.msra.mxu0 0.0
    %1714 = vmatprep.subr.mxu0 0.0
    %1715 = vmatpush1.msra.mxu0 0.0
    %1716 = vmatprep.subr.mxu0 0.0
    %1717 = vmatpush1.msra.mxu0 0.0
    %1718 = vmatprep.subr.mxu0 0.0
    %1719 = vmatpush1.msra.mxu0 0.0
    %1720 = vmatprep.subr.mxu0 0.0
    %1721 = vmatpush1.msra.mxu0 0.0
    %1722 = vmatprep.subr.mxu0 0.0
    %1723 = vmatpush1.msra.mxu0 0.0
    %1724 = vmatprep.subr.mxu0 0.0
    %1725 = vmatpush1.msra.mxu0 0.0
    %1726 = vmatprep.subr.mxu0 0.0
    %1727 = vmatpush1.msra.mxu0 0.0
    %1728 = vmatprep.subr.mxu0 0.0
    %1729 = vmatpush1.msra.mxu0 0.0
    %1730 = vmatprep.subr.mxu0 0.0
    %1731 = vmatpush1.msra.mxu0 0.0
    %1732 = vmatprep.subr.mxu0 0.0
    %1733 = vmatpush1.msra.mxu0 0.0
    %1734 = vmatprep.subr.mxu0 0.0
    %1735 = vmatpush1.msra.mxu0 0.0
    %1736 = vmatprep.subr.mxu0 0.0
    %1737 = vmatpush1.msra.mxu0 0.0
    %1738 = vmatprep.mubr.f32.mxu0 0.0
    %1739 = vmatmul.mubr.f32.gmra.mrb[0].mxu0 %v1672
    %v1740 = vpop.f32.mrb[0].mxu0
    %v1741 = vadd.f32 0.0, %v1740
    %v1742 = vpop.f32.mrb[0].mxu0
    %1743 = vdwg.mxu0
    %v1744 = vadd.f32 %v1232, %v1741
    %v1745 = vxor.u32 %v1744, 2147483648
    %v1746 = vmul.f32 %v1745, 1.442695
    %v1747 = vpow.pop %v1746
    %v1748 = vadd.f32 %v1747, 1.0
    %v1749 = vrcp.pop %v1748
    %v1750 = vmul.f32 1.0, %v1749
    %v1751 = vmul.f32 %v1750, 2.0
    %v1752 = vsub.f32 %v1751, 1.0
    %v1754 = vrot.slane %v1657, 6
    %v1756 = vmul.f32 %v1750, %v1754
    %1758 = vrot.lane.b32.xlu0 %v1752, 64
    %v1759 = vpop.permute.xlu0 %1758
    %v1761 = vmul.f32 %v1750, %v1759
    %1763 = vrot.lane.b32.xlu0 %v1761, 32
    %v1764 = vpop.permute.xlu0 %1763
    %v1766 = vadd.f32 %v1756, %v1764
    %v1767 = vtanh.pop %v1766
    %1769 = vrot.lane.b32.xlu0 %v1767, 64
    %v1770 = vpop.permute.xlu0 %1769
    %v1772 = vmul.f32 %v1750, %v1770
    %1774 = vrot.lane.b32.xlu0 %v1772, 32
    %v1775 = vpop.permute.xlu0 %1774
    %1777 = vst.msk [vmem:[#allocation6 + $0x8] sm:$0x3] %vm348, %v1775
    %v1778 = vsel %vm163, %v1775, 0
    %1780 = vmatprep.subr.mxu0 0.0
    %1781 = vmatpush1.msra.mxu0 %v1140
    %1782 = vmatprep.subr.mxu0 0.0
    %1783 = vmatpush1.msra.mxu0 %v1141
    %1784 = vmatprep.subr.mxu0 0.0
    %1785 = vmatpush1.msra.mxu0 %v1142
    %1786 = vmatprep.subr.mxu0 0.0
    %1787 = vmatpush1.msra.mxu0 %v1143
    %1788 = vmatprep.subr.mxu0 0.0
    %1789 = vmatpush1.msra.mxu0 0.0
    %1790 = vmatprep.subr.mxu0 0.0
    %1791 = vmatpush1.msra.mxu0 0.0
    %1792 = vmatprep.subr.mxu0 0.0
    %1793 = vmatpush1.msra.mxu0 0.0
    %1794 = vmatprep.subr.mxu0 0.0
    %1795 = vmatpush1.msra.mxu0 0.0
    %1796 = vmatprep.subr.mxu0 0.0
    %1797 = vmatpush1.msra.mxu0 0.0
    %1798 = vmatprep.subr.mxu0 0.0
    %1799 = vmatpush1.msra.mxu0 0.0
    %1800 = vmatprep.subr.mxu0 0.0
    %1801 = vmatpush1.msra.mxu0 0.0
    %1802 = vmatprep.subr.mxu0 0.0
    %1803 = vmatpush1.msra.mxu0 0.0
    %1804 = vmatprep.subr.mxu0 0.0
    %1805 = vmatpush1.msra.mxu0 0.0
    %1806 = vmatprep.subr.mxu0 0.0
    %1807 = vmatpush1.msra.mxu0 0.0
    %1808 = vmatprep.subr.mxu0 0.0
    %1809 = vmatpush1.msra.mxu0 0.0
    %1810 = vmatprep.subr.mxu0 0.0
    %1811 = vmatpush1.msra.mxu0 0.0
    %1812 = vmatprep.subr.mxu0 0.0
    %1813 = vmatpush1.msra.mxu0 0.0
    %1814 = vmatprep.subr.mxu0 0.0
    %1815 = vmatpush1.msra.mxu0 0.0
    %1816 = vmatprep.subr.mxu0 0.0
    %1817 = vmatpush1.msra.mxu0 0.0
    %1818 = vmatprep.subr.mxu0 0.0
    %1819 = vmatpush1.msra.mxu0 0.0
    %1820 = vmatprep.subr.mxu0 0.0
    %1821 = vmatpush1.msra.mxu0 0.0
    %1822 = vmatprep.subr.mxu0 0.0
    %1823 = vmatpush1.msra.mxu0 0.0
    %1824 = vmatprep.subr.mxu0 0.0
    %1825 = vmatpush1.msra.mxu0 0.0
    %1826 = vmatprep.subr.mxu0 0.0
    %1827 = vmatpush1.msra.mxu0 0.0
    %1828 = vmatprep.subr.mxu0 0.0
    %1829 = vmatpush1.msra.mxu0 0.0
    %1830 = vmatprep.subr.mxu0 0.0
    %1831 = vmatpush1.msra.mxu0 0.0
    %1832 = vmatprep.subr.mxu0 0.0
    %1833 = vmatpush1.msra.mxu0 0.0
    %1834 = vmatprep.subr.mxu0 0.0
    %1835 = vmatpush1.msra.mxu0 0.0
    %1836 = vmatprep.subr.mxu0 0.0
    %1837 = vmatpush1.msra.mxu0 0.0
    %1838 = vmatprep.subr.mxu0 0.0
    %1839 = vmatpush1.msra.mxu0 0.0
    %1840 = vmatprep.subr.mxu0 0.0
    %1841 = vmatpush1.msra.mxu0 0.0
    %1842 = vmatprep.subr.mxu0 0.0
    %1843 = vmatpush1.msra.mxu0 0.0
    %1844 = vmatprep.mubr.f32.mxu0 0.0
    %1845 = vmatmul.mubr.f32.gmra.mrb[0].mxu0 %v1778
    %v1846 = vpop.f32.mrb[0].mxu0
    %v1847 = vadd.f32 0.0, %v1846
    %v1848 = vpop.f32.mrb[0].mxu0
    %1849 = vdwg.mxu0
    %v1851 = vrot.slane %v1847, 6
    %v1853 = vadd.f32 %v1232, %v1851
    %v1854 = vxor.u32 %v1853, 2147483648
    %v1855 = vmul.f32 %v1854, 1.442695
    %v1856 = vpow.pop %v1855
    %v1857 = vadd.f32 %v1856, 1.0
    %v1858 = vrcp.pop %v1857
    %v1859 = vmul.f32 1.0, %v1858
    %v1860 = vmul.f32 %v1859, 2.0
    %v1861 = vsub.f32 %v1860, 1.0
    %v1863 = vrot.slane %v1766, 6
    %v1865 = vmul.f32 %v1859, %v1863
    %1867 = vrot.lane.b32.xlu0 %v1861, 64
    %v1868 = vpop.permute.xlu0 %1867
    %v1870 = vmul.f32 %v1859, %v1868
    %1872 = vrot.lane.b32.xlu0 %v1870, 32
    %v1873 = vpop.permute.xlu0 %1872
    %v1875 = vadd.f32 %v1865, %v1873
    %v1876 = vtanh.pop %v1875
    %1878 = vrot.lane.b32.xlu0 %v1876, 64
    %v1879 = vpop.permute.xlu0 %1878
    %v1881 = vmul.f32 %v1859, %v1879
    %1883 = vrot.lane.b32.xlu0 %v1881, 32
    %v1884 = vpop.permute.xlu0 %1883
    %1886 = vst.msk [vmem:[#allocation6 + $0x8] sm:$0xc] %vm458, %v1884
    %v1887 = vrot.slane %v1881, 2
    %1888 = vrot.lane.b32.xlu0 %v1887, 32
    %v1889 = vpop.permute.xlu0 %1888
    %v1890 = vsel %vm163, %v1889, 0
    %1892 = vmatprep.subr.mxu0 0.0
    %1893 = vmatpush1.msra.mxu0 %v1140
    %1894 = vmatprep.subr.mxu0 0.0
    %1895 = vmatpush1.msra.mxu0 %v1141
    %1896 = vmatprep.subr.mxu0 0.0
    %1897 = vmatpush1.msra.mxu0 %v1142
    %1898 = vmatprep.subr.mxu0 0.0
    %1899 = vmatpush1.msra.mxu0 %v1143
    %1900 = vmatprep.subr.mxu0 0.0
    %1901 = vmatpush1.msra.mxu0 0.0
    %1902 = vmatprep.subr.mxu0 0.0
    %1903 = vmatpush1.msra.mxu0 0.0
    %1904 = vmatprep.subr.mxu0 0.0
    %1905 = vmatpush1.msra.mxu0 0.0
    %1906 = vmatprep.subr.mxu0 0.0
    %1907 = vmatpush1.msra.mxu0 0.0
    %1908 = vmatprep.subr.mxu0 0.0
    %1909 = vmatpush1.msra.mxu0 0.0
    %1910 = vmatprep.subr.mxu0 0.0
    %1911 = vmatpush1.msra.mxu0 0.0
    %1912 = vmatprep.subr.mxu0 0.0
    %1913 = vmatpush1.msra.mxu0 0.0
    %1914 = vmatprep.subr.mxu0 0.0
    %1915 = vmatpush1.msra.mxu0 0.0
    %1916 = vmatprep.subr.mxu0 0.0
    %1917 = vmatpush1.msra.mxu0 0.0
    %1918 = vmatprep.subr.mxu0 0.0
    %1919 = vmatpush1.msra.mxu0 0.0
    %1920 = vmatprep.subr.mxu0 0.0
    %1921 = vmatpush1.msra.mxu0 0.0
    %1922 = vmatprep.subr.mxu0 0.0
    %1923 = vmatpush1.msra.mxu0 0.0
    %1924 = vmatprep.subr.mxu0 0.0
    %1925 = vmatpush1.msra.mxu0 0.0
    %1926 = vmatprep.subr.mxu0 0.0
    %1927 = vmatpush1.msra.mxu0 0.0
    %1928 = vmatprep.subr.mxu0 0.0
    %1929 = vmatpush1.msra.mxu0 0.0
    %1930 = vmatprep.subr.mxu0 0.0
    %1931 = vmatpush1.msra.mxu0 0.0
    %1932 = vmatprep.subr.mxu0 0.0
    %1933 = vmatpush1.msra.mxu0 0.0
    %1934 = vmatprep.subr.mxu0 0.0
    %1935 = vmatpush1.msra.mxu0 0.0
    %1936 = vmatprep.subr.mxu0 0.0
    %1937 = vmatpush1.msra.mxu0 0.0
    %1938 = vmatprep.subr.mxu0 0.0
    %1939 = vmatpush1.msra.mxu0 0.0
    %1940 = vmatprep.subr.mxu0 0.0
    %1941 = vmatpush1.msra.mxu0 0.0
    %1942 = vmatprep.subr.mxu0 0.0
    %1943 = vmatpush1.msra.mxu0 0.0
    %1944 = vmatprep.subr.mxu0 0.0
    %1945 = vmatpush1.msra.mxu0 0.0
    %1946 = vmatprep.subr.mxu0 0.0
    %1947 = vmatpush1.msra.mxu0 0.0
    %1948 = vmatprep.subr.mxu0 0.0
    %1949 = vmatpush1.msra.mxu0 0.0
    %1950 = vmatprep.subr.mxu0 0.0
    %1951 = vmatpush1.msra.mxu0 0.0
    %1952 = vmatprep.subr.mxu0 0.0
    %1953 = vmatpush1.msra.mxu0 0.0
    %1954 = vmatprep.subr.mxu0 0.0
    %1955 = vmatpush1.msra.mxu0 0.0
    %1956 = vmatprep.mubr.f32.mxu0 0.0
    %1957 = vmatmul.mubr.f32.gmra.mrb[0].mxu0 %v1890
    %v1958 = vpop.f32.mrb[0].mxu0
    %v1959 = vadd.f32 0.0, %v1958
    %v1960 = vpop.f32.mrb[0].mxu0
    %1961 = vdwg.mxu0
    %v1963 = vrot.slane %v1959, 4
    %v1965 = vadd.f32 %v1232, %v1963
    %v1966 = vxor.u32 %v1965, 2147483648
    %v1967 = vmul.f32 %v1966, 1.442695
    %v1968 = vpow.pop %v1967
    %v1969 = vadd.f32 %v1968, 1.0
    %v1970 = vrcp.pop %v1969
    %v1971 = vmul.f32 1.0, %v1970
    %v1972 = vmul.f32 %v1971, 2.0
    %v1973 = vsub.f32 %v1972, 1.0
    %v1975 = vrot.slane %v1875, 6
    %v1977 = vmul.f32 %v1971, %v1975
    %1979 = vrot.lane.b32.xlu0 %v1973, 64
    %v1980 = vpop.permute.xlu0 %1979
    %v1982 = vmul.f32 %v1971, %v1980
    %1984 = vrot.lane.b32.xlu0 %v1982, 32
    %v1985 = vpop.permute.xlu0 %1984
    %v1987 = vadd.f32 %v1977, %v1985
    %v1988 = vtanh.pop %v1987
    %1990 = vrot.lane.b32.xlu0 %v1988, 64
    %v1991 = vpop.permute.xlu0 %1990
    %v1993 = vmul.f32 %v1971, %v1991
    %1995 = vrot.lane.b32.xlu0 %v1993, 32
    %v1996 = vpop.permute.xlu0 %1995
    %1998 = vst.msk [vmem:[#allocation6 + $0x8] sm:$0x30] %vm571, %v1996
    %v1999 = vrot.slane %v1993, 4
    %2000 = vrot.lane.b32.xlu0 %v1999, 32
    %v2001 = vpop.permute.xlu0 %2000
    %v2002 = vsel %vm163, %v2001, 0
    %2004 = vmatprep.subr.mxu0 0.0
    %2005 = vmatpush1.msra.mxu0 %v1140
    %2006 = vmatprep.subr.mxu0 0.0
    %2007 = vmatpush1.msra.mxu0 %v1141
    %2008 = vmatprep.subr.mxu0 0.0
    %2009 = vmatpush1.msra.mxu0 %v1142
    %2010 = vmatprep.subr.mxu0 0.0
    %2011 = vmatpush1.msra.mxu0 %v1143
    %2012 = vmatprep.subr.mxu0 0.0
    %2013 = vmatpush1.msra.mxu0 0.0
    %2014 = vmatprep.subr.mxu0 0.0
    %2015 = vmatpush1.msra.mxu0 0.0
    %2016 = vmatprep.subr.mxu0 0.0
    %2017 = vmatpush1.msra.mxu0 0.0
    %2018 = vmatprep.subr.mxu0 0.0
    %2019 = vmatpush1.msra.mxu0 0.0
    %2020 = vmatprep.subr.mxu0 0.0
    %2021 = vmatpush1.msra.mxu0 0.0
    %2022 = vmatprep.subr.mxu0 0.0
    %2023 = vmatpush1.msra.mxu0 0.0
    %2024 = vmatprep.subr.mxu0 0.0
    %2025 = vmatpush1.msra.mxu0 0.0
    %2026 = vmatprep.subr.mxu0 0.0
    %2027 = vmatpush1.msra.mxu0 0.0
    %2028 = vmatprep.subr.mxu0 0.0
    %2029 = vmatpush1.msra.mxu0 0.0
    %2030 = vmatprep.subr.mxu0 0.0
    %2031 = vmatpush1.msra.mxu0 0.0
    %2032 = vmatprep.subr.mxu0 0.0
    %2033 = vmatpush1.msra.mxu0 0.0
    %2034 = vmatprep.subr.mxu0 0.0
    %2035 = vmatpush1.msra.mxu0 0.0
    %2036 = vmatprep.subr.mxu0 0.0
    %2037 = vmatpush1.msra.mxu0 0.0
    %2038 = vmatprep.subr.mxu0 0.0
    %2039 = vmatpush1.msra.mxu0 0.0
    %2040 = vmatprep.subr.mxu0 0.0
    %2041 = vmatpush1.msra.mxu0 0.0
    %2042 = vmatprep.subr.mxu0 0.0
    %2043 = vmatpush1.msra.mxu0 0.0
    %2044 = vmatprep.subr.mxu0 0.0
    %2045 = vmatpush1.msra.mxu0 0.0
    %2046 = vmatprep.subr.mxu0 0.0
    %2047 = vmatpush1.msra.mxu0 0.0
    %2048 = vmatprep.subr.mxu0 0.0
    %2049 = vmatpush1.msra.mxu0 0.0
    %2050 = vmatprep.subr.mxu0 0.0
    %2051 = vmatpush1.msra.mxu0 0.0
    %2052 = vmatprep.subr.mxu0 0.0
    %2053 = vmatpush1.msra.mxu0 0.0
    %2054 = vmatprep.subr.mxu0 0.0
    %2055 = vmatpush1.msra.mxu0 0.0
    %2056 = vmatprep.subr.mxu0 0.0
    %2057 = vmatpush1.msra.mxu0 0.0
    %2058 = vmatprep.subr.mxu0 0.0
    %2059 = vmatpush1.msra.mxu0 0.0
    %2060 = vmatprep.subr.mxu0 0.0
    %2061 = vmatpush1.msra.mxu0 0.0
    %2062 = vmatprep.subr.mxu0 0.0
    %2063 = vmatpush1.msra.mxu0 0.0
    %2064 = vmatprep.subr.mxu0 0.0
    %2065 = vmatpush1.msra.mxu0 0.0
    %2066 = vmatprep.subr.mxu0 0.0
    %2067 = vmatpush1.msra.mxu0 0.0
    %2068 = vmatprep.mubr.f32.mxu0 0.0
    %2069 = vmatmul.mubr.f32.gmra.mrb[0].mxu0 %v2002
    %v2070 = vpop.f32.mrb[0].mxu0
    %v2071 = vadd.f32 0.0, %v2070
    %v2072 = vpop.f32.mrb[0].mxu0
    %2073 = vdwg.mxu0
    %v2075 = vrot.slane %v2071, 2
    %v2077 = vadd.f32 %v1232, %v2075
    %v2078 = vxor.u32 %v2077, 2147483648
    %v2079 = vmul.f32 %v2078, 1.442695
    %v2080 = vpow.pop %v2079
    %v2081 = vadd.f32 %v2080, 1.0
    %v2082 = vrcp.pop %v2081
    %v2083 = vmul.f32 1.0, %v2082
    %v2084 = vmul.f32 %v2083, 2.0
    %v2085 = vsub.f32 %v2084, 1.0
    %v2087 = vrot.slane %v1987, 6
    %v2089 = vmul.f32 %v2083, %v2087
    %2091 = vrot.lane.b32.xlu0 %v2085, 64
    %v2092 = vpop.permute.xlu0 %2091
    %v2094 = vmul.f32 %v2083, %v2092
    %2096 = vrot.lane.b32.xlu0 %v2094, 32
    %v2097 = vpop.permute.xlu0 %2096
    %v2099 = vadd.f32 %v2089, %v2097
    %v2100 = vtanh.pop %v2099
    %2102 = vrot.lane.b32.xlu0 %v2100, 64
    %v2103 = vpop.permute.xlu0 %2102
    %v2105 = vmul.f32 %v2083, %v2103
    %2107 = vrot.lane.b32.xlu0 %v2105, 32
    %v2108 = vpop.permute.xlu0 %2107
    %2110 = vst.msk [vmem:[#allocation6 + $0x8] sm:$0xc0] %vm684, %v2108
    %s2111 = scalar_lea.vmem [#allocation7], 2
    %2112 = vst.msk [vmem:[%s2111 - $0x6] sm:$0xc0] %vm684, %v2108
    %2114 = vrot.lane.b32.xlu0 %v2099, 96
    %v2115 = vpop.permute.xlu0 %2114
    %s2117 = scalar_lea.vmem [#allocation9], 2
    %2118 = vst.msk [vmem:[%s2117 - $0x6] sm:$0xc0] %vm684, %v2115
    // Predicated region
    $region26: #{tpu_custom_call.1} parent=1 // pred_check
      _
    $region27: #{tpu_custom_call.1} parent=1 // pred_check_branch
      %2120 = sbr.rel (0) target = $region29
    $region28: #{tpu_custom_call.1} parent=1 // pred_region
      %s2122 = ssub.s32 256, 256
      %2123 = vsyncadd [#allocation5], %s2122
      %s2124 = sshll.u32 [#allocation6], 4
      %s2125 = int_to_ptr.vmem [resolvable:$true] %s2124
      %2130 = dma.vmem_to_hbm [thread:$0]  %s2125, 256, %s5, [#allocation5], 128, 128, 8
    $region29: #{tpu_custom_call.1} parent=1 // pred_fallthru
      _
    // Predicated region
    $region30: #{tpu_custom_call.1} parent=1 // pred_check
      _
    $region31: #{tpu_custom_call.1} parent=1 // pred_check_branch
      %2132 = sbr.rel (0) target = $region33
    $region32: #{tpu_custom_call.1} parent=1 // pred_region
      %s2134 = ssub.s32 64, 64
      %2135 = vsyncadd [#allocation8], %s2134
      %s2136 = sshll.u32 [#allocation7], 4
      %s2137 = int_to_ptr.vmem [resolvable:$true] %s2136
      %2142 = dma.vmem_to_hbm [thread:$0]  %s2137, 64, %s6, [#allocation8], 32, 32, 2
    $region33: #{tpu_custom_call.1} parent=1 // pred_fallthru
      _
    // Predicated region
    $region34: #{tpu_custom_call.1} parent=1 // pred_check
      _
    $region35: #{tpu_custom_call.1} parent=1 // pred_check_branch
      %2144 = sbr.rel (0) target = $region37
    $region36: #{tpu_custom_call.1} parent=1 // pred_region
      %s2146 = ssub.s32 64, 64
      %2147 = vsyncadd [#allocation8], %s2146
      %s2148 = sshll.u32 [#allocation9], 4
      %s2149 = int_to_ptr.vmem [resolvable:$true] %s2148
      %2154 = dma.vmem_to_hbm [thread:$0]  %s2149, 64, %s7, [#allocation8], 32, 32, 2
    $region37: #{tpu_custom_call.1} parent=1 // pred_fallthru
      _
    // Predicated region
    $region38: #{tpu_custom_call.1} parent=1 // pred_check
      _
    $region39: #{tpu_custom_call.1} parent=1 // pred_check_branch
      %2156 = sbr.rel (0) target = $region41
    $region40: #{tpu_custom_call.1} parent=1 // pred_region
      %2157 = dma.done [#allocation5], 256
    $region41: #{tpu_custom_call.1} parent=1 // pred_fallthru
      _
    // Predicated region
    $region42: #{tpu_custom_call.1} parent=1 // pred_check
      _
    $region43: #{tpu_custom_call.1} parent=1 // pred_check_branch
      %2159 = sbr.rel (0) target = $region45
    $region44: #{tpu_custom_call.1} parent=1 // pred_region
      %2160 = dma.done [#allocation8], 64
    $region45: #{tpu_custom_call.1} parent=1 // pred_fallthru
      _
    // Predicated region
    $region46: #{tpu_custom_call.1} parent=1 // pred_check
      _
    $region47: #{tpu_custom_call.1} parent=1 // pred_check_branch
      %2162 = sbr.rel (0) target = $region49
    $region48: #{tpu_custom_call.1} parent=1 // pred_region
      %2163 = dma.done [#allocation8], 64
    $region49: #{tpu_custom_call.1} parent=1 // pred_fallthru
      _
    %2164 = vsyncpa [#allocation4], 1
    %2165 = vsyncpa [#allocation5], 1
    %2166 = vsyncpa [#allocation8], 1

</llo_original>
